<compile_context>
chip_gen: v6e
topology: v6e:2x2x1
jax: 0.10.0
libtpu: 0.0.40
codegen_flags: <defaults>
</compile_context>

<pallas_src>
import math

import jax
import jax.numpy as jnp
from jax import lax
from jax.experimental import pallas as pl
from jax.experimental.pallas import tpu as pltpu

# ----------------------------- module config -----------------------------
C_S = 16          # single-rep channels
C_Z = 8           # pair-rep channels
C_HIDDEN = 16     # per-head hidden
NO_HEADS = 4
NO_QK_POINTS = 4
NO_V_POINTS = 8
INF = 1e5
EPS = 1e-8


# ----------------------------- Pallas kernel -----------------------------
def _ipa_attn_kernel(wb_ref, qkq_ref, qkk_ref, kbias_ref, vvp_ref, z_ref,
                     mq_ref, mk_ref, out_ref):
    h = pl.program_id(2)
    cz = z_ref.shape[1]

    # Fused logits on the MXU: one matmul gives  scale_qk*q.k + hw*qp.kp  (K = C + 3*Pq).
    a = lax.dot_general(qkq_ref[...], qkk_ref[...],
                        (((1,), (1,)), ((), ())),
                        preferred_element_type=jnp.float32)             # [TQ, N]

    # Pair bias computed in-kernel from the resident z block: sum_c Wb[h,c]*z[:,c,:].
    # (linear_b's bias term is a per-row constant in the logits -> dropped.)
    for c in range(cz):
        a = a + wb_ref[h, c] * z_ref[:, c, :].astype(jnp.float32)

    # key point-norm term (the -0.5||qp_i||^2 row constant is dropped) + additive mask
    # (exact reference form INF*(m_i*m_j - 1)).
    a = a + kbias_ref[...]
    a = a + INF * (mq_ref[...] * mk_ref[...] - 1.0)

    # softmax over keys; keep weights unnormalized, scale the small output slab once.
    a = a - jnp.max(a, axis=-1, keepdims=True)
    e = jnp.exp(a)                                                       # [TQ, N]
    inv = pl.reciprocal(jnp.sum(e, axis=-1, keepdims=True), approx=False)  # exact [TQ, 1]

    # one MXU pass for the merged (v | v_pts) values: [TQ, N] @ [N, C + 3*Pv]
    o_main = jnp.dot(e, vvp_ref[...], preferred_element_type=jnp.float32)
    n_cv = o_main.shape[-1]
    out_ref[:, :n_cv] = o_main * inv

    # o_pair: per-channel multiply + lane reduce over the resident z block
    # (never materializes a [TQ, Cz, N] f32 temporary).
    cols = [jnp.sum(e * z_ref[:, c, :].astype(jnp.float32), axis=-1, keepdims=True)
            for c in range(cz)]
    out_ref[:, n_cv:] = jnp.concatenate(cols, axis=-1) * inv


# ----------------------------- tiling / VMEM helpers -----------------------------
def _vmem_budget_bytes():
    # Cap the kernel's scoped VMEM at 48 MiB so it fits v7x's 64 MiB/TC with headroom
    # for Mosaic internal scratch; use at most ~60% of the reported capacity.
    cap = 128 << 20
    try:
        cap = int(pltpu.get_tpu_info().vmem_capacity_bytes)
    except Exception:
        pass
    return int(min(48 << 20, int(cap * 0.6)))


def _vmem_estimate(tq, nk, ck, cv, cz, cout):
    # double-buffered input/output blocks + f32 in-kernel [TQ, N] temporaries
    blocks = (tq * ck + nk * ck + nk + nk * cv + tq + nk + tq * cout) * 4 \
        + tq * cz * nk * 2
    temps = 4 * tq * nk * 4
    return 2 * blocks + temps


def _choose_tile_q(nq_pad, nk, ck, cv, cz, cout):
    budget = min(_vmem_budget_bytes(), 40 << 20)
    for t in (256, 128, 64, 32, 16, 8):
        if t > nq_pad or nq_pad % t != 0:
            continue
        if _vmem_estimate(t, nk, ck, cv, cz, cout) <= budget:
            return t
    # query axis is padded to a multiple of 8 by the caller, so 8 always divides
    return 8 if nq_pad >= 8 else nq_pad


def pallas_ipa_attention(wb, qkq, qkk, kbias, vvp, z_t, mq, mk):
    """wb: [H,Cz] (SMEM); qkq: [B,H,Nq,C+3Pq]; qkk/vvp: [B,H,Nk,*]; kbias: [B,H,1,Nk];
    z_t: [B,Nq,Cz,Nk] bf16; mq: [B,Nq,1]; mk: [B,1,Nk]."""
    B, H, Nq, Ck = qkq.shape
    Nk = qkk.shape[2]
    Cv = vvp.shape[-1]
    Cz = z_t.shape[-2]
    Cout = Cv + Cz

    tq = _choose_tile_q(Nq, Nk, Ck, Cv, Cz, Cout)
    nq = Nq // tq

    q_map = lambda b, qi, h: (b, h, qi, 0)    # query-tiled, per-head blocks
    k_map = lambda b, qi, h: (b, h, 0, 0)     # full-key, per-head blocks
    z_map = lambda b, qi, h: (b, qi, 0, 0)    # z shared across heads (resident: h innermost)
    mq_map = lambda b, qi, h: (b, qi, 0)
    mk_map = lambda b, qi, h: (b, 0, 0)

    est = _vmem_estimate(tq, Nk, Ck, Cv, Cz, Cout)
    vmem_limit = int(min(max(est + (8 << 20), 32 << 20), _vmem_budget_bytes()))

    # TODO(synk): for very long sequences (N >~ 2-4K on v7x) add a keys grid axis with
    # online-softmax accumulation instead of keeping full-key blocks resident.
    return pl.pallas_call(
        _ipa_attn_kernel,
        grid=(B, nq, H),
        in_specs=[
            pl.BlockSpec(memory_space=pltpu.MemorySpace.SMEM),    # Wb (sqrt(1/3) folded)
            pl.BlockSpec((None, None, tq, Ck), q_map),            # [q*scale | sqrt(hw)*q_pts]
            pl.BlockSpec((None, None, Nk, Ck), k_map),            # [k       | sqrt(hw)*k_pts]
            pl.BlockSpec((None, None, 1, Nk), k_map),             # -0.5*||k_pts_j||^2
            pl.BlockSpec((None, None, Nk, Cv), k_map),            # [v | v_pts]
            pl.BlockSpec((None, tq, Cz, Nk), z_map),              # z (bf16, keys lane-dense)
            pl.BlockSpec((None, tq, 1), mq_map),                  # query mask column
            pl.BlockSpec((None, 1, Nk), mk_map),                  # key mask row
        ],
        out_specs=pl.BlockSpec((None, None, tq, Cout), q_map),
        out_shape=jax.ShapeDtypeStruct((B, H, Nq, Cout), jnp.float32),
        compiler_params=pltpu.CompilerParams(
            dimension_semantics=("parallel", "parallel", "arbitrary"),
            vmem_limit_bytes=vmem_limit),
    )(wb, qkq, qkk, kbias, vvp, z_t, mq, mk)


# ----------------------------- parameters -----------------------------
def init_params(key):
    hc = C_HIDDEN * NO_HEADS
    ks = jax.random.split(key, 12)

    def w(k, shape, scale=0.1):
        return (scale * jax.random.normal(k, shape)).astype(jnp.float32)

    # TODO(synk): linear_out uses init='final' (zero init) in the original; use small
    # random values here so the synthetic test produces a non-trivial output.
    concat_dim = NO_HEADS * (C_Z + C_HIDDEN + NO_V_POINTS * 4)
    return dict(
        Wq=w(ks[0], (C_S, hc)), bq=w(ks[1], (hc,)),
        Wkv=w(ks[2], (C_S, 2 * hc)), bkv=w(ks[3], (2 * hc,)),
        Wqp=w(ks[4], (C_S, NO_HEADS * 3 * NO_QK_POINTS)),
        bqp=w(ks[5], (NO_HEADS * 3 * NO_QK_POINTS,)),
        Wkvp=w(ks[6], (C_S, NO_HEADS * 3 * (NO_QK_POINTS + NO_V_POINTS))),
        bkvp=w(ks[7], (NO_HEADS * 3 * (NO_QK_POINTS + NO_V_POINTS),)),
        Wb=w(ks[8], (C_Z, NO_HEADS)), bb=w(ks[9], (NO_HEADS,)),
        head_weights=w(ks[10], (NO_HEADS,), scale=0.5),
        Wout=w(ks[11], (concat_dim, C_S)),
        bout=jnp.zeros((C_S,), jnp.float32),
    )


# ----------------------------- forward (glue + kernel) -----------------------------
def ipa_forward(params, s, z, rot, trans, mask):
    """s: [B,N,C_s], z: [B,N,N,C_z], rot: [B,N,3,3], trans: [B,N,3], mask: [B,N]."""
    B, N, _ = s.shape
    H, C, Pq, Pv = NO_HEADS, C_HIDDEN, NO_QK_POINTS, NO_V_POINTS

    # scalar q / k / v projections
    q = (s @ params['Wq'] + params['bq']).reshape(B, N, H, C)
    kv = (s @ params['Wkv'] + params['bkv']).reshape(B, N, H, 2 * C)
    k, v = kv[..., :C], kv[..., C:]

    # PointProjection: linear -> split in 3 coord chunks -> [B,N,H,P,3] -> rigid apply
    def point_proj(W, bW, npts):
        p_loc = s @ W + bW                                   # [B, N, H*3*npts]
        p_loc = p_loc.reshape(B, N, 3, H, npts)              # torch.split(dim=-1)+stack(-1)
        p_loc = jnp.transpose(p_loc, (0, 1, 3, 4, 2))        # [B, N, H, npts, 3]
        # rigids[..., None, None].apply: global = R @ p + t
        return jnp.einsum('bnxy,bnhpy->bnhpx', rot, p_loc) + trans[:, :, None, None, :]

    q_pts = point_proj(params['Wqp'], params['bqp'], Pq)                 # [B,N,H,Pq,3]
    kv_pts = point_proj(params['Wkvp'], params['bkvp'], Pq + Pv)         # [B,N,H,Pq+Pv,3]
    k_pts, v_pts = kv_pts[..., :Pq, :], kv_pts[..., Pq:, :]

    # head weights: softplus(hw) * sqrt(1/(3*(Pq*9/2))); fold sqrt into q/k points
    hw = jax.nn.softplus(params['head_weights']) * math.sqrt(1.0 / (3 * (Pq * 9.0 / 2)))
    sqrt_hw = jnp.sqrt(hw)                                               # [H]
    scale_qk = math.sqrt(1.0 / (3 * C))
    scale_b = math.sqrt(1.0 / 3.0)

    # center q/k points per batch (squared-distance term is translation invariant) so the
    # expanded-norm form (||.||^2 - 2 cross + ||.||^2) stays well conditioned
    center = jnp.mean(trans, axis=1)[:, None, None, None, :]
    qp_c = q_pts - center
    kp_c = k_pts - center

    # rearrange to kernel layout [B, H, N, feat]; fold sqrt(1/3C) into q
    q_t = jnp.transpose(q, (0, 2, 1, 3)) * scale_qk
    k_t = jnp.transpose(k, (0, 2, 1, 3))
    v_t = jnp.transpose(v, (0, 2, 1, 3))
    qp_t = jnp.transpose(qp_c, (0, 2, 1, 3, 4)).reshape(B, H, N, Pq * 3) \
        * sqrt_hw[None, :, None, None]
    kp_t = jnp.transpose(kp_c, (0, 2, 1, 3, 4)).reshape(B, H, N, Pq * 3) \
        * sqrt_hw[None, :, None, None]
    vp_t = jnp.transpose(v_pts, (0, 2, 1, 3, 4)).reshape(B, H, N, Pv * 3)

    # merged MXU operands (kept f32: the point-cross-term / key-norm rewrite is
    # cancellation-sensitive in bf16; these streams are small next to z)
    qkq = jnp.concatenate([q_t, qp_t], axis=-1)          # [B,H,N,C+3Pq]
    qkk = jnp.concatenate([k_t, kp_t], axis=-1)          # [B,H,N,C+3Pq]
    vvp = jnp.concatenate([v_t, vp_t], axis=-1)          # [B,H,N,C+3Pv]

    # per-key point-norm bias (per head); pair bias is computed in-kernel from z
    kbias = (-0.5 * jnp.sum(kp_t * kp_t, axis=-1))[:, :, None, :]        # [B,H,1,N]
    # sqrt(1/3)*Wb, laid out [H, Cz] for SMEM scalar reads; linear_b's bias term is a
    # per-row logit constant and is dropped (softmax row-shift invariant).
    wb = (scale_b * params['Wb']).T.astype(jnp.float32)                  # [H, Cz]

    mask_q = mask[:, :, None].astype(jnp.float32)                        # [B,N,1]
    mask_k = mask[:, None, :].astype(jnp.float32)                        # [B,1,N]

    # z lane-dense over keys, bf16 DMA (upcast per-channel inside the kernel)
    z_t = jnp.swapaxes(z, -1, -2).astype(jnp.bfloat16)                   # [B,N,Cz,N]

    # pad the query axis to a multiple of 8 so q-tiles satisfy the sublane rule for any N
    Npad = ((N + 7) // 8) * 8
    pad = Npad - N
    if pad:
        qkq = jnp.pad(qkq, ((0, 0), (0, 0), (0, pad), (0, 0)))
        z_t = jnp.pad(z_t, ((0, 0), (0, pad), (0, 0), (0, 0)))
        mask_q = jnp.pad(mask_q, ((0, 0), (0, pad), (0, 0)))

    out = pallas_ipa_attention(wb, qkq, qkk, kbias, vvp, z_t, mask_q, mask_k)
    out = out[:, :, :N, :]                                               # [B,H,N,C+3Pv+Cz]

    o = out[..., :C]
    o_pt_g = out[..., C:C + Pv * 3]
    o_pair = out[..., C + Pv * 3:]

    # o: [B,H,N,C] -> [B,N,H*C]
    o_flat = jnp.transpose(o, (0, 2, 1, 3)).reshape(B, N, H * C)
    # o_pt: global frame [B,H,N,Pv*3] -> [B,N,H,Pv,3], then invert_apply: R^T (p - t)
    o_pt_g = jnp.transpose(o_pt_g.reshape(B, H, N, Pv, 3), (0, 2, 1, 3, 4))
    o_pt = jnp.einsum('bnyx,bnhpy->bnhpx', rot, o_pt_g - trans[:, :, None, None, :])
    o_pt_norm = jnp.sqrt(jnp.sum(o_pt ** 2, axis=-1) + EPS).reshape(B, N, H * Pv)
    o_pt_flat = o_pt.reshape(B, N, H * Pv, 3)
    o_pt_x, o_pt_y, o_pt_z = o_pt_flat[..., 0], o_pt_flat[..., 1], o_pt_flat[..., 2]
    # o_pair: [B,H,N,Cz] -> [B,N,H*Cz]
    o_pair_flat = jnp.transpose(o_pair, (0, 2, 1, 3)).reshape(B, N, H * C_Z)

    cat = jnp.concatenate([o_flat, o_pt_x, o_pt_y, o_pt_z, o_pt_norm, o_pair_flat],
                          axis=-1)
    return cat @ params['Wout'] + params['bout']


# ----------------------------- test driver -----------------------------
if __name__ == "__main__":
    B, N = 2, 8
    key = jax.random.PRNGKey(0)
    k_par, k_s, k_z, k_r, k_t = jax.random.split(key, 5)

    params = init_params(k_par)
    s = jax.random.normal(k_s, (B, N, C_S), jnp.float32)
    z = jax.random.normal(k_z, (B, N, N, C_Z), jnp.float32)
    # random rigid frames: rotations via QR of random matrices + random translations
    rot, _ = jnp.linalg.qr(jax.random.normal(k_r, (B, N, 3, 3), jnp.float32))
    trans = jax.random.normal(k_t, (B, N, 3), jnp.float32)
    mask = jnp.ones((B, N), jnp.float32).at[0, 6:].set(0.0)

    out = jax.jit(ipa_forward)(params, s, z, rot, trans, mask)
    out = jax.block_until_ready(out)

    assert out.shape == (B, N, C_S), out.shape
    assert bool(jnp.all(jnp.isfinite(out)))
    print("KERNEL_OK")
</pallas_src>

<mosaic_0001>
module attributes {stable_mosaic.version = 11 : i64} {
  func.func @_ipa_attn_kernel(%arg0: i32, %arg1: i32, %arg2: i32, %arg3: memref<4x8xf32, #tpu.memory_space<smem>>, %arg4: memref<1x1x8x28xf32, #tpu.memory_space<vmem>>, %arg5: memref<1x1x8x28xf32, #tpu.memory_space<vmem>>, %arg6: memref<1x1x1x8xf32, #tpu.memory_space<vmem>>, %arg7: memref<1x1x8x40xf32, #tpu.memory_space<vmem>>, %arg8: memref<1x8x8x8xbf16, #tpu.memory_space<vmem>>, %arg9: memref<1x8x1xf32, #tpu.memory_space<vmem>>, %arg10: memref<1x1x8xf32, #tpu.memory_space<vmem>>, %arg11: memref<1x1x8x48xf32, #tpu.memory_space<vmem>>) attributes {dimension_semantics = [#tpu.dimension_semantics<parallel>, #tpu.dimension_semantics<parallel>, #tpu.dimension_semantics<arbitrary>], iteration_bounds = array<i64: 2, 1, 4>, scalar_prefetch = 0 : i64, scratch_operands = 0 : i64, tpu.core_type = #tpu.core_type<tc>, window_params = [{transform_indices = @transform_0, window_bounds = array<i64: 4, 8>}, {transform_indices = @transform_1, window_bounds = array<i64: 1, 1, 8, 28>}, {transform_indices = @transform_2, window_bounds = array<i64: 1, 1, 8, 28>}, {transform_indices = @transform_3, window_bounds = array<i64: 1, 1, 1, 8>}, {transform_indices = @transform_4, window_bounds = array<i64: 1, 1, 8, 40>}, {transform_indices = @transform_5, window_bounds = array<i64: 1, 8, 8, 8>}, {transform_indices = @transform_6, window_bounds = array<i64: 1, 8, 1>}, {transform_indices = @transform_7, window_bounds = array<i64: 1, 1, 8>}, {transform_indices = @transform_8, window_bounds = array<i64: 1, 1, 8, 48>}]} {
    %c0 = arith.constant 0 : index
    %c0_0 = arith.constant 0 : index
    %c0_1 = arith.constant 0 : index
    %c0_2 = arith.constant 0 : index
    %0 = vector.load %arg4[%c0, %c0_0, %c0_1, %c0_2] : memref<1x1x8x28xf32, #tpu.memory_space<vmem>>, vector<1x1x8x28xf32>
    %1 = vector.shape_cast %0 : vector<1x1x8x28xf32> to vector<8x28xf32>
    %c0_3 = arith.constant 0 : index
    %c0_4 = arith.constant 0 : index
    %c0_5 = arith.constant 0 : index
    %c0_6 = arith.constant 0 : index
    %2 = vector.load %arg5[%c0_3, %c0_4, %c0_5, %c0_6] : memref<1x1x8x28xf32, #tpu.memory_space<vmem>>, vector<1x1x8x28xf32>
    %3 = vector.shape_cast %2 : vector<1x1x8x28xf32> to vector<8x28xf32>
    %cst = arith.constant dense<0.000000e+00> : vector<8x8xf32>
    %4 = tpu.matmul %1, %3, %cst {dimension_numbers = #tpu.dot_dimension_numbers<[1], [1], [0], [0], [0, 0, 1, 0], [], []>} : vector<8x28xf32>, vector<8x28xf32>, vector<8x8xf32> -> vector<8x8xf32>
    %5 = arith.index_cast %arg2 : i32 to index
    %c0_7 = arith.constant 0 : index
    %6 = memref.load %arg3[%5, %c0_7] : memref<4x8xf32, #tpu.memory_space<smem>>
    %c0_8 = arith.constant 0 : index
    %c0_9 = arith.constant 0 : index
    %c0_10 = arith.constant 0 : index
    %c0_11 = arith.constant 0 : index
    %7 = vector.load %arg8[%c0_8, %c0_9, %c0_10, %c0_11] : memref<1x8x8x8xbf16, #tpu.memory_space<vmem>>, vector<1x8x1x8xbf16>
    %8 = vector.shape_cast %7 : vector<1x8x1x8xbf16> to vector<8x8xbf16>
    %9 = arith.extf %8 : vector<8x8xbf16> to vector<8x8xf32>
    %10 = vector.broadcast %6 : f32 to vector<8x8xf32>
    %11 = arith.mulf %10, %9 : vector<8x8xf32>
    %12 = arith.addf %4, %11 : vector<8x8xf32>
    %13 = arith.index_cast %arg2 : i32 to index
    %c1 = arith.constant 1 : index
    %14 = memref.load %arg3[%13, %c1] : memref<4x8xf32, #tpu.memory_space<smem>>
    %c0_12 = arith.constant 0 : index
    %c0_13 = arith.constant 0 : index
    %c1_14 = arith.constant 1 : index
    %c0_15 = arith.constant 0 : index
    %15 = vector.load %arg8[%c0_12, %c0_13, %c1_14, %c0_15] : memref<1x8x8x8xbf16, #tpu.memory_space<vmem>>, vector<1x8x1x8xbf16>
    %16 = vector.shape_cast %15 : vector<1x8x1x8xbf16> to vector<8x8xbf16>
    %17 = arith.extf %16 : vector<8x8xbf16> to vector<8x8xf32>
    %18 = vector.broadcast %14 : f32 to vector<8x8xf32>
    %19 = arith.mulf %18, %17 : vector<8x8xf32>
    %20 = arith.addf %12, %19 : vector<8x8xf32>
    %21 = arith.index_cast %arg2 : i32 to index
    %c2 = arith.constant 2 : index
    %22 = memref.load %arg3[%21, %c2] : memref<4x8xf32, #tpu.memory_space<smem>>
    %c0_16 = arith.constant 0 : index
    %c0_17 = arith.constant 0 : index
    %c2_18 = arith.constant 2 : index
    %c0_19 = arith.constant 0 : index
    %23 = vector.load %arg8[%c0_16, %c0_17, %c2_18, %c0_19] : memref<1x8x8x8xbf16, #tpu.memory_space<vmem>>, vector<1x8x1x8xbf16>
    %24 = vector.shape_cast %23 : vector<1x8x1x8xbf16> to vector<8x8xbf16>
    %25 = arith.extf %24 : vector<8x8xbf16> to vector<8x8xf32>
    %26 = vector.broadcast %22 : f32 to vector<8x8xf32>
    %27 = arith.mulf %26, %25 : vector<8x8xf32>
    %28 = arith.addf %20, %27 : vector<8x8xf32>
    %29 = arith.index_cast %arg2 : i32 to index
    %c3 = arith.constant 3 : index
    %30 = memref.load %arg3[%29, %c3] : memref<4x8xf32, #tpu.memory_space<smem>>
    %c0_20 = arith.constant 0 : index
    %c0_21 = arith.constant 0 : index
    %c3_22 = arith.constant 3 : index
    %c0_23 = arith.constant 0 : index
    %31 = vector.load %arg8[%c0_20, %c0_21, %c3_22, %c0_23] : memref<1x8x8x8xbf16, #tpu.memory_space<vmem>>, vector<1x8x1x8xbf16>
    %32 = vector.shape_cast %31 : vector<1x8x1x8xbf16> to vector<8x8xbf16>
    %33 = arith.extf %32 : vector<8x8xbf16> to vector<8x8xf32>
    %34 = vector.broadcast %30 : f32 to vector<8x8xf32>
    %35 = arith.mulf %34, %33 : vector<8x8xf32>
    %36 = arith.addf %28, %35 : vector<8x8xf32>
    %37 = arith.index_cast %arg2 : i32 to index
    %c4 = arith.constant 4 : index
    %38 = memref.load %arg3[%37, %c4] : memref<4x8xf32, #tpu.memory_space<smem>>
    %c0_24 = arith.constant 0 : index
    %c0_25 = arith.constant 0 : index
    %c4_26 = arith.constant 4 : index
    %c0_27 = arith.constant 0 : index
    %39 = vector.load %arg8[%c0_24, %c0_25, %c4_26, %c0_27] : memref<1x8x8x8xbf16, #tpu.memory_space<vmem>>, vector<1x8x1x8xbf16>
    %40 = vector.shape_cast %39 : vector<1x8x1x8xbf16> to vector<8x8xbf16>
    %41 = arith.extf %40 : vector<8x8xbf16> to vector<8x8xf32>
    %42 = vector.broadcast %38 : f32 to vector<8x8xf32>
    %43 = arith.mulf %42, %41 : vector<8x8xf32>
    %44 = arith.addf %36, %43 : vector<8x8xf32>
    %45 = arith.index_cast %arg2 : i32 to index
    %c5 = arith.constant 5 : index
    %46 = memref.load %arg3[%45, %c5] : memref<4x8xf32, #tpu.memory_space<smem>>
    %c0_28 = arith.constant 0 : index
    %c0_29 = arith.constant 0 : index
    %c5_30 = arith.constant 5 : index
    %c0_31 = arith.constant 0 : index
    %47 = vector.load %arg8[%c0_28, %c0_29, %c5_30, %c0_31] : memref<1x8x8x8xbf16, #tpu.memory_space<vmem>>, vector<1x8x1x8xbf16>
    %48 = vector.shape_cast %47 : vector<1x8x1x8xbf16> to vector<8x8xbf16>
    %49 = arith.extf %48 : vector<8x8xbf16> to vector<8x8xf32>
    %50 = vector.broadcast %46 : f32 to vector<8x8xf32>
    %51 = arith.mulf %50, %49 : vector<8x8xf32>
    %52 = arith.addf %44, %51 : vector<8x8xf32>
    %53 = arith.index_cast %arg2 : i32 to index
    %c6 = arith.constant 6 : index
    %54 = memref.load %arg3[%53, %c6] : memref<4x8xf32, #tpu.memory_space<smem>>
    %c0_32 = arith.constant 0 : index
    %c0_33 = arith.constant 0 : index
    %c6_34 = arith.constant 6 : index
    %c0_35 = arith.constant 0 : index
    %55 = vector.load %arg8[%c0_32, %c0_33, %c6_34, %c0_35] : memref<1x8x8x8xbf16, #tpu.memory_space<vmem>>, vector<1x8x1x8xbf16>
    %56 = vector.shape_cast %55 : vector<1x8x1x8xbf16> to vector<8x8xbf16>
    %57 = arith.extf %56 : vector<8x8xbf16> to vector<8x8xf32>
    %58 = vector.broadcast %54 : f32 to vector<8x8xf32>
    %59 = arith.mulf %58, %57 : vector<8x8xf32>
    %60 = arith.addf %52, %59 : vector<8x8xf32>
    %61 = arith.index_cast %arg2 : i32 to index
    %c7 = arith.constant 7 : index
    %62 = memref.load %arg3[%61, %c7] : memref<4x8xf32, #tpu.memory_space<smem>>
    %c0_36 = arith.constant 0 : index
    %c0_37 = arith.constant 0 : index
    %c7_38 = arith.constant 7 : index
    %c0_39 = arith.constant 0 : index
    %63 = vector.load %arg8[%c0_36, %c0_37, %c7_38, %c0_39] : memref<1x8x8x8xbf16, #tpu.memory_space<vmem>>, vector<1x8x1x8xbf16>
    %64 = vector.shape_cast %63 : vector<1x8x1x8xbf16> to vector<8x8xbf16>
    %65 = arith.extf %64 : vector<8x8xbf16> to vector<8x8xf32>
    %66 = vector.broadcast %62 : f32 to vector<8x8xf32>
    %67 = arith.mulf %66, %65 : vector<8x8xf32>
    %68 = arith.addf %60, %67 : vector<8x8xf32>
    %c0_40 = arith.constant 0 : index
    %c0_41 = arith.constant 0 : index
    %c0_42 = arith.constant 0 : index
    %c0_43 = arith.constant 0 : index
    %69 = vector.load %arg6[%c0_40, %c0_41, %c0_42, %c0_43] : memref<1x1x1x8xf32, #tpu.memory_space<vmem>>, vector<1x1x1x8xf32>
    %70 = vector.shape_cast %69 : vector<1x1x1x8xf32> to vector<1x8xf32>
    %71 = vector.broadcast %70 : vector<1x8xf32> to vector<8x8xf32>
    %72 = arith.addf %68, %71 : vector<8x8xf32>
    %c0_44 = arith.constant 0 : index
    %c0_45 = arith.constant 0 : index
    %c0_46 = arith.constant 0 : index
    %73 = vector.load %arg9[%c0_44, %c0_45, %c0_46] : memref<1x8x1xf32, #tpu.memory_space<vmem>>, vector<1x8x1xf32>
    %74 = vector.shape_cast %73 : vector<1x8x1xf32> to vector<8x1xf32>
    %c0_47 = arith.constant 0 : index
    %c0_48 = arith.constant 0 : index
    %c0_49 = arith.constant 0 : index
    %75 = vector.load %arg10[%c0_47, %c0_48, %c0_49] : memref<1x1x8xf32, #tpu.memory_space<vmem>>, vector<1x1x8xf32>
    %76 = vector.shape_cast %75 : vector<1x1x8xf32> to vector<1x8xf32>
    %77 = vector.broadcast %74 : vector<8x1xf32> to vector<8x8xf32>
    %78 = vector.broadcast %76 : vector<1x8xf32> to vector<8x8xf32>
    %79 = arith.mulf %77, %78 : vector<8x8xf32>
    %cst_50 = arith.constant 1.000000e+00 : f32
    %80 = vector.broadcast %cst_50 : f32 to vector<8x8xf32>
    %81 = arith.subf %79, %80 : vector<8x8xf32>
    %cst_51 = arith.constant 1.000000e+05 : f32
    %82 = vector.broadcast %cst_51 : f32 to vector<8x8xf32>
    %83 = arith.mulf %82, %81 : vector<8x8xf32>
    %84 = arith.addf %72, %83 : vector<8x8xf32>
    %cst_52 = arith.constant dense<0xFF800000> : vector<8xf32>
    %85 = vector.multi_reduction <maximumf>, %84, %cst_52 [1] : vector<8x8xf32> to vector<8xf32>
    %86 = vector.shape_cast %85 : vector<8xf32> to vector<8x1xf32>
    %87 = vector.broadcast %86 : vector<8x1xf32> to vector<8x8xf32>
    %88 = arith.subf %84, %87 : vector<8x8xf32>
    %89 = math.exp %88 : vector<8x8xf32>
    %cst_53 = arith.constant dense<0.000000e+00> : vector<8xf32>
    %90 = vector.multi_reduction <add>, %89, %cst_53 [1] : vector<8x8xf32> to vector<8xf32>
    %91 = vector.shape_cast %90 : vector<8xf32> to vector<8x1xf32>
    %92 = tpu.reciprocal %91 : vector<8x1xf32> -> vector<8x1xf32>
    %c0_54 = arith.constant 0 : index
    %c0_55 = arith.constant 0 : index
    %c0_56 = arith.constant 0 : index
    %c0_57 = arith.constant 0 : index
    %93 = vector.load %arg7[%c0_54, %c0_55, %c0_56, %c0_57] : memref<1x1x8x40xf32, #tpu.memory_space<vmem>>, vector<1x1x8x40xf32>
    %94 = vector.shape_cast %93 : vector<1x1x8x40xf32> to vector<8x40xf32>
    %cst_58 = arith.constant dense<0.000000e+00> : vector<8x40xf32>
    %95 = tpu.matmul %89, %94, %cst_58 {dimension_numbers = #tpu.dot_dimension_numbers<[1], [0], [0], [1], [0, 0, 1, 1], [], []>} : vector<8x8xf32>, vector<8x40xf32>, vector<8x40xf32> -> vector<8x40xf32>
    %96 = vector.broadcast %92 : vector<8x1xf32> to vector<8x40xf32>
    %97 = arith.mulf %95, %96 : vector<8x40xf32>
    %c0_59 = arith.constant 0 : index
    %c0_60 = arith.constant 0 : index
    %c0_61 = arith.constant 0 : index
    %c0_62 = arith.constant 0 : index
    %98 = vector.load %arg11[%c0_59, %c0_60, %c0_61, %c0_62] : memref<1x1x8x48xf32, #tpu.memory_space<vmem>>, vector<1x1x8x40xf32>
    %99 = vector.shape_cast %98 : vector<1x1x8x40xf32> to vector<8x40xf32>
    %100 = vector.shape_cast %97 : vector<8x40xf32> to vector<1x1x8x40xf32>
    tpu.vector_store %arg11[%c0_59, %c0_60, %c0_61, %c0_62], %100 {strides = array<i32>} : memref<1x1x8x48xf32, #tpu.memory_space<vmem>>, vector<1x1x8x40xf32>,
    %c0_63 = arith.constant 0 : index
    %c0_64 = arith.constant 0 : index
    %c0_65 = arith.constant 0 : index
    %c0_66 = arith.constant 0 : index
    %101 = vector.load %arg8[%c0_63, %c0_64, %c0_65, %c0_66] : memref<1x8x8x8xbf16, #tpu.memory_space<vmem>>, vector<1x8x1x8xbf16>
    %102 = vector.shape_cast %101 : vector<1x8x1x8xbf16> to vector<8x8xbf16>
    %103 = arith.extf %102 : vector<8x8xbf16> to vector<8x8xf32>
    %104 = arith.mulf %89, %103 : vector<8x8xf32>
    %cst_67 = arith.constant dense<0.000000e+00> : vector<8xf32>
    %105 = vector.multi_reduction <add>, %104, %cst_67 [1] : vector<8x8xf32> to vector<8xf32>
    %106 = vector.shape_cast %105 : vector<8xf32> to vector<8x1xf32>
    %c0_68 = arith.constant 0 : index
    %c0_69 = arith.constant 0 : index
    %c1_70 = arith.constant 1 : index
    %c0_71 = arith.constant 0 : index
    %107 = vector.load %arg8[%c0_68, %c0_69, %c1_70, %c0_71] : memref<1x8x8x8xbf16, #tpu.memory_space<vmem>>, vector<1x8x1x8xbf16>
    %108 = vector.shape_cast %107 : vector<1x8x1x8xbf16> to vector<8x8xbf16>
    %109 = arith.extf %108 : vector<8x8xbf16> to vector<8x8xf32>
    %110 = arith.mulf %89, %109 : vector<8x8xf32>
    %cst_72 = arith.constant dense<0.000000e+00> : vector<8xf32>
    %111 = vector.multi_reduction <add>, %110, %cst_72 [1] : vector<8x8xf32> to vector<8xf32>
    %112 = vector.shape_cast %111 : vector<8xf32> to vector<8x1xf32>
    %c0_73 = arith.constant 0 : index
    %c0_74 = arith.constant 0 : index
    %c2_75 = arith.constant 2 : index
    %c0_76 = arith.constant 0 : index
    %113 = vector.load %arg8[%c0_73, %c0_74, %c2_75, %c0_76] : memref<1x8x8x8xbf16, #tpu.memory_space<vmem>>, vector<1x8x1x8xbf16>
    %114 = vector.shape_cast %113 : vector<1x8x1x8xbf16> to vector<8x8xbf16>
    %115 = arith.extf %114 : vector<8x8xbf16> to vector<8x8xf32>
    %116 = arith.mulf %89, %115 : vector<8x8xf32>
    %cst_77 = arith.constant dense<0.000000e+00> : vector<8xf32>
    %117 = vector.multi_reduction <add>, %116, %cst_77 [1] : vector<8x8xf32> to vector<8xf32>
    %118 = vector.shape_cast %117 : vector<8xf32> to vector<8x1xf32>
    %c0_78 = arith.constant 0 : index
    %c0_79 = arith.constant 0 : index
    %c3_80 = arith.constant 3 : index
    %c0_81 = arith.constant 0 : index
    %119 = vector.load %arg8[%c0_78, %c0_79, %c3_80, %c0_81] : memref<1x8x8x8xbf16, #tpu.memory_space<vmem>>, vector<1x8x1x8xbf16>
    %120 = vector.shape_cast %119 : vector<1x8x1x8xbf16> to vector<8x8xbf16>
    %121 = arith.extf %120 : vector<8x8xbf16> to vector<8x8xf32>
    %122 = arith.mulf %89, %121 : vector<8x8xf32>
    %cst_82 = arith.constant dense<0.000000e+00> : vector<8xf32>
    %123 = vector.multi_reduction <add>, %122, %cst_82 [1] : vector<8x8xf32> to vector<8xf32>
    %124 = vector.shape_cast %123 : vector<8xf32> to vector<8x1xf32>
    %c0_83 = arith.constant 0 : index
    %c0_84 = arith.constant 0 : index
    %c4_85 = arith.constant 4 : index
    %c0_86 = arith.constant 0 : index
    %125 = vector.load %arg8[%c0_83, %c0_84, %c4_85, %c0_86] : memref<1x8x8x8xbf16, #tpu.memory_space<vmem>>, vector<1x8x1x8xbf16>
    %126 = vector.shape_cast %125 : vector<1x8x1x8xbf16> to vector<8x8xbf16>
    %127 = arith.extf %126 : vector<8x8xbf16> to vector<8x8xf32>
    %128 = arith.mulf %89, %127 : vector<8x8xf32>
    %cst_87 = arith.constant dense<0.000000e+00> : vector<8xf32>
    %129 = vector.multi_reduction <add>, %128, %cst_87 [1] : vector<8x8xf32> to vector<8xf32>
    %130 = vector.shape_cast %129 : vector<8xf32> to vector<8x1xf32>
    %c0_88 = arith.constant 0 : index
    %c0_89 = arith.constant 0 : index
    %c5_90 = arith.constant 5 : index
    %c0_91 = arith.constant 0 : index
    %131 = vector.load %arg8[%c0_88, %c0_89, %c5_90, %c0_91] : memref<1x8x8x8xbf16, #tpu.memory_space<vmem>>, vector<1x8x1x8xbf16>
    %132 = vector.shape_cast %131 : vector<1x8x1x8xbf16> to vector<8x8xbf16>
    %133 = arith.extf %132 : vector<8x8xbf16> to vector<8x8xf32>
    %134 = arith.mulf %89, %133 : vector<8x8xf32>
    %cst_92 = arith.constant dense<0.000000e+00> : vector<8xf32>
    %135 = vector.multi_reduction <add>, %134, %cst_92 [1] : vector<8x8xf32> to vector<8xf32>
    %136 = vector.shape_cast %135 : vector<8xf32> to vector<8x1xf32>
    %c0_93 = arith.constant 0 : index
    %c0_94 = arith.constant 0 : index
    %c6_95 = arith.constant 6 : index
    %c0_96 = arith.constant 0 : index
    %137 = vector.load %arg8[%c0_93, %c0_94, %c6_95, %c0_96] : memref<1x8x8x8xbf16, #tpu.memory_space<vmem>>, vector<1x8x1x8xbf16>
    %138 = vector.shape_cast %137 : vector<1x8x1x8xbf16> to vector<8x8xbf16>
    %139 = arith.extf %138 : vector<8x8xbf16> to vector<8x8xf32>
    %140 = arith.mulf %89, %139 : vector<8x8xf32>
    %cst_97 = arith.constant dense<0.000000e+00> : vector<8xf32>
    %141 = vector.multi_reduction <add>, %140, %cst_97 [1] : vector<8x8xf32> to vector<8xf32>
    %142 = vector.shape_cast %141 : vector<8xf32> to vector<8x1xf32>
    %c0_98 = arith.constant 0 : index
    %c0_99 = arith.constant 0 : index
    %c7_100 = arith.constant 7 : index
    %c0_101 = arith.constant 0 : index
    %143 = vector.load %arg8[%c0_98, %c0_99, %c7_100, %c0_101] : memref<1x8x8x8xbf16, #tpu.memory_space<vmem>>, vector<1x8x1x8xbf16>
    %144 = vector.shape_cast %143 : vector<1x8x1x8xbf16> to vector<8x8xbf16>
    %145 = arith.extf %144 : vector<8x8xbf16> to vector<8x8xf32>
    %146 = arith.mulf %89, %145 : vector<8x8xf32>
    %cst_102 = arith.constant dense<0.000000e+00> : vector<8xf32>
    %147 = vector.multi_reduction <add>, %146, %cst_102 [1] : vector<8x8xf32> to vector<8xf32>
    %148 = vector.shape_cast %147 : vector<8xf32> to vector<8x1xf32>
    %149 = tpu.concatenate %106, %112, %118, %124, %130, %136, %142, %148 in 1 : vector<8x1xf32>, vector<8x1xf32>, vector<8x1xf32>, vector<8x1xf32>, vector<8x1xf32>, vector<8x1xf32>, vector<8x1xf32>, vector<8x1xf32> -> vector<8x8xf32>
    %150 = vector.broadcast %92 : vector<8x1xf32> to vector<8x8xf32>
    %151 = arith.mulf %149, %150 : vector<8x8xf32>
    %c0_103 = arith.constant 0 : index
    %c0_104 = arith.constant 0 : index
    %c0_105 = arith.constant 0 : index
    %c40 = arith.constant 40 : index
    %152 = vector.load %arg11[%c0_103, %c0_104, %c0_105, %c40] : memref<1x1x8x48xf32, #tpu.memory_space<vmem>>, vector<1x1x8x8xf32>
    %153 = vector.shape_cast %152 : vector<1x1x8x8xf32> to vector<8x8xf32>
    %154 = vector.shape_cast %151 : vector<8x8xf32> to vector<1x1x8x8xf32>
    tpu.vector_store %arg11[%c0_103, %c0_104, %c0_105, %c40], %154 {strides = array<i32>} : memref<1x1x8x48xf32, #tpu.memory_space<vmem>>, vector<1x1x8x8xf32>,
    return
  }
  func.func @transform_0(%arg0: i32, %arg1: i32, %arg2: i32) -> (i32, i32) {
    %c0_i32 = arith.constant 0 : i32
    %c0_i32_0 = arith.constant 0 : i32
    %c0_i32_1 = arith.constant 0 : i32
    return %c0_i32, %c0_i32_0 : i32, i32
  }
  func.func @transform_1(%arg0: i32, %arg1: i32, %arg2: i32) -> (i32, i32, i32, i32) {
    %c0_i32 = arith.constant 0 : i32
    %c0_i32_0 = arith.constant 0 : i32
    return %arg0, %arg2, %arg1, %c0_i32 : i32, i32, i32, i32
  }
  func.func @transform_2(%arg0: i32, %arg1: i32, %arg2: i32) -> (i32, i32, i32, i32) {
    %c0_i32 = arith.constant 0 : i32
    %c0_i32_0 = arith.constant 0 : i32
    %c0_i32_1 = arith.constant 0 : i32
    return %arg0, %arg2, %c0_i32, %c0_i32_0 : i32, i32, i32, i32
  }
  func.func @transform_3(%arg0: i32, %arg1: i32, %arg2: i32) -> (i32, i32, i32, i32) {
    %c0_i32 = arith.constant 0 : i32
    %c0_i32_0 = arith.constant 0 : i32
    %c0_i32_1 = arith.constant 0 : i32
    return %arg0, %arg2, %c0_i32, %c0_i32_0 : i32, i32, i32, i32
  }
  func.func @transform_4(%arg0: i32, %arg1: i32, %arg2: i32) -> (i32, i32, i32, i32) {
    %c0_i32 = arith.constant 0 : i32
    %c0_i32_0 = arith.constant 0 : i32
    %c0_i32_1 = arith.constant 0 : i32
    return %arg0, %arg2, %c0_i32, %c0_i32_0 : i32, i32, i32, i32
  }
  func.func @transform_5(%arg0: i32, %arg1: i32, %arg2: i32) -> (i32, i32, i32, i32) {
    %c0_i32 = arith.constant 0 : i32
    %c0_i32_0 = arith.constant 0 : i32
    %c0_i32_1 = arith.constant 0 : i32
    return %arg0, %arg1, %c0_i32, %c0_i32_0 : i32, i32, i32, i32
  }
  func.func @transform_6(%arg0: i32, %arg1: i32, %arg2: i32) -> (i32, i32, i32) {
    %c0_i32 = arith.constant 0 : i32
    %c0_i32_0 = arith.constant 0 : i32
    return %arg0, %arg1, %c0_i32 : i32, i32, i32
  }
  func.func @transform_7(%arg0: i32, %arg1: i32, %arg2: i32) -> (i32, i32, i32) {
    %c0_i32 = arith.constant 0 : i32
    %c0_i32_0 = arith.constant 0 : i32
    %c0_i32_1 = arith.constant 0 : i32
    return %arg0, %c0_i32, %c0_i32_0 : i32, i32, i32
  }
  func.func @transform_8(%arg0: i32, %arg1: i32, %arg2: i32) -> (i32, i32, i32, i32) {
    %c0_i32 = arith.constant 0 : i32
    %c0_i32_0 = arith.constant 0 : i32
    return %arg0, %arg2, %arg1, %c0_i32 : i32, i32, i32, i32
  }
}

</mosaic_0001>

<llo_original>
// kernel: ipa_forward.1
$region0: #{ipa_forward.1}
  #allocation0 [shape = 'u32[]', space=smem, size = 0x4, offset = 0x4, fixed_abs, tag = 'smem constant byte address 0x4 - core index']
  #allocation1 [shape = 'u32[144,128]{1,0:T(1,128)}', space=vmem, size = 0x12000, scoped, tag = 'internal scratch']
  %s0 = inlined_call_operand.vmem [shape: f32[4,8], index: 0, kind: input, shape index: {}]
  %s1 = inlined_call_operand.vmem [shape: f32[2,4,8,28], index: 1, kind: input, shape index: {}]
  %s2 = inlined_call_operand.vmem [shape: f32[2,4,8,28], index: 2, kind: input, shape index: {}]
  %s3 = inlined_call_operand.vmem [shape: f32[2,4,1,8], index: 3, kind: input, shape index: {}]
  %s4 = inlined_call_operand.vmem [shape: f32[2,4,8,40], index: 4, kind: input, shape index: {}]
  %s5 = inlined_call_operand.vmem [shape: bf16[2,8,8,8], index: 5, kind: input, shape index: {}]
  %s6 = inlined_call_operand.vmem [shape: f32[2,8,1], index: 6, kind: input, shape index: {}]
  %s7 = inlined_call_operand.vmem [shape: f32[2,1,8], index: 7, kind: input, shape index: {}]
  %s8 = inlined_call_operand.vmem [shape: f32[2,4,8,48], index: 8, kind: output, shape index: {}]
  %s9 = sld [smem:[#allocation0]]
  $region69: #{ipa_forward.1} parent=0
    _
  %s11 = ssub.s32 1, %s9
  %s12 = scalar_select 0, %s11, %s9
  $region1: #{ipa_forward.1} parent=0
    #allocation2 [shape = 'u8[2048]{0}', space=smem, size = 0x800, scoped, tag = 'input window, operand 0, single buffered']
    #allocation3 [shape = 's32[2]{0}', space=sflag, size = 0x8, scoped, tag = 'scoped memory for ipa_forward.1']
    %13 = vsyncpa [#allocation3], 0
    loop: start=0, step=1, limit=10
    $region2: #{ipa_forward.1} parent=1 // loop_pre_header
      _
    $region3: #{ipa_forward.1} parent=1 // loop_header
      %s15 = sphi 0, %s19
      %p16 = scmp.ge.s32.totalorder %s15, 10
      %s22 = sphi 0, %s41
      %s23 = sphi 0, %s37
      %s24 = sphi 0, %s33
      %s25 = sphi 0, %s22
      %s26 = sphi 0, %s23
      %s27 = sphi 0, %s24
      %s28 = sphi 0, %s25
      %s29 = sphi 0, %s26
      %s30 = sphi 0, %s27
      %s42 = sphi 0, %s42
      %s44 = sphi 0, %s42
      %s45 = sphi 0, %s44
      %s59 = sphi 0, %s45
      %s69 = sphi 0, %s71
      %s72 = sphi 0, %s69
      %s73 = sphi 0, %s72
      %s89 = sphi 0, %s73
      %s97 = sphi 0, %s99
      %s100 = sphi 0, %s97
      %s101 = sphi 0, %s100
      %s117 = sphi 0, %s101
      %s125 = sphi 0, %s127
      %s128 = sphi 0, %s125
      %s129 = sphi 0, %s128
      %s145 = sphi 0, %s129
      %s153 = sphi 0, %s155
      %s156 = sphi 0, %s153
      %s157 = sphi 0, %s156
      %s173 = sphi 0, %s157
      %s181 = sphi 0, %s183
      %s184 = sphi 0, %s181
      %s185 = sphi 0, %s184
      %s201 = sphi 0, %s185
      %s209 = sphi 0, %s211
      %s212 = sphi 0, %s209
      %s213 = sphi 0, %s212
      %s229 = sphi 0, %s213
      %s235 = sphi 0, %s237
      %s238 = sphi 0, %s235
      %s239 = sphi 0, %s238
      %s255 = sphi 0, %s239
      %s265 = sphi 0, %s267
      %s268 = sphi 0, %s265
      %s269 = sphi 0, %s268
      %s285 = sphi 0, %s269
    $region4: #{ipa_forward.1} parent=1 // loop_header_branch
      %18 = sbr.rel (%p16) target = $region8
    $region5: #{ipa_forward.1} parent=1 // loop_body
      %s20 = ssub.s32 %s15, 1
      %s21 = ssub.s32 %s15, 2
      %s31 = sadd.s32 1, %s24
      %p32 = scmp.ge.s32.totalorder %s31, 4
      %s33 = scalar_select %p32, 0, %s31
      %s34 = sadd.s32 1, %s23
      %s35 = scalar_select %p32, %s34, %s23
      %p36 = scmp.ge.s32.totalorder %s35, 1
      %s37 = scalar_select %p36, 0, %s35
      %s38 = sadd.s32 1, %s22
      %s39 = scalar_select %p36, %s38, %s22
      %p40 = scmp.ge.s32.totalorder %s39, 2
      %s41 = scalar_select %p40, 0, %s39
      %s43 = sadd.s32 %s42, 1
      %p46 = scmp.eq.s32.totalorder %s15, 7
      %p47 = scmp.ne.s32.totalorder %s42, %s44
      %p48 = scmp.eq.s32.totalorder %s15, 0
      %p49 = por %p47, %p48
      %p50 = scmp.ne.s32.totalorder %s42, %s44
      %p51 = scmp.eq.s32.totalorder %s20, 7
      %p52 = por %p50, %p51
      %p53 = scmp.ne.s32.totalorder %s44, %s45
      %p54 = scmp.eq.s32.totalorder %s20, 0
      %p55 = por %p53, %p54
      %p56 = scmp.ne.s32.totalorder %s44, %s45
      %p57 = scmp.eq.s32.totalorder %s21, 7
      %p58 = por %p56, %p57
      %p60 = scmp.ne.s32.totalorder %s45, %s59
      %p61 = scmp.eq.s32.totalorder %s21, 0
      %p62 = por %p60, %p61
      %s63 = ssub.s32 %s22, %s41
      %s64 = ssub.s32 %s24, %s33
      %s65 = sor.u32 %s63, %s64
      %s66 = ssub.s32 %s23, %s37
      %s67 = sor.u32 %s65, %s66
      %p68 = scmp.eq.s32.totalorder %s67, 0
      %s70 = sadd.s32 %s69, 1
      %s71 = scalar_select %p68, %s69, %s70
      %p74 = pneg %p68
      %p75 = scmp.eq.s32.totalorder %s15, 7
      %p76 = por %p74, %p75
      %p77 = scmp.ne.s32.totalorder %s69, %s72
      %p78 = scmp.eq.s32.totalorder %s15, 0
      %p79 = por %p77, %p78
      %p80 = scmp.ne.s32.totalorder %s69, %s72
      %p81 = scmp.eq.s32.totalorder %s20, 7
      %p82 = por %p80, %p81
      %p83 = scmp.ne.s32.totalorder %s72, %s73
      %p84 = scmp.eq.s32.totalorder %s20, 0
      %p85 = por %p83, %p84
      %p86 = scmp.ne.s32.totalorder %s72, %s73
      %p87 = scmp.eq.s32.totalorder %s21, 7
      %p88 = por %p86, %p87
      %p90 = scmp.ne.s32.totalorder %s73, %s89
      %p91 = scmp.eq.s32.totalorder %s21, 0
      %p92 = por %p90, %p91
      %s93 = ssub.s32 %s22, %s41
      %s94 = ssub.s32 %s24, %s33
      %s95 = sor.u32 %s93, %s94
      %p96 = scmp.eq.s32.totalorder %s95, 0
      %s98 = sadd.s32 %s97, 1
      %s99 = scalar_select %p96, %s97, %s98
      %p102 = pneg %p96
      %p103 = scmp.eq.s32.totalorder %s15, 7
      %p104 = por %p102, %p103
      %p105 = scmp.ne.s32.totalorder %s97, %s100
      %p106 = scmp.eq.s32.totalorder %s15, 0
      %p107 = por %p105, %p106
      %p108 = scmp.ne.s32.totalorder %s97, %s100
      %p109 = scmp.eq.s32.totalorder %s20, 7
      %p110 = por %p108, %p109
      %p111 = scmp.ne.s32.totalorder %s100, %s101
      %p112 = scmp.eq.s32.totalorder %s20, 0
      %p113 = por %p111, %p112
      %p114 = scmp.ne.s32.totalorder %s100, %s101
      %p115 = scmp.eq.s32.totalorder %s21, 7
      %p116 = por %p114, %p115
      %p118 = scmp.ne.s32.totalorder %s101, %s117
      %p119 = scmp.eq.s32.totalorder %s21, 0
      %p120 = por %p118, %p119
      %s121 = ssub.s32 %s22, %s41
      %s122 = ssub.s32 %s24, %s33
      %s123 = sor.u32 %s121, %s122
      %p124 = scmp.eq.s32.totalorder %s123, 0
      %s126 = sadd.s32 %s125, 1
      %s127 = scalar_select %p124, %s125, %s126
      %p130 = pneg %p124
      %p131 = scmp.eq.s32.totalorder %s15, 7
      %p132 = por %p130, %p131
      %p133 = scmp.ne.s32.totalorder %s125, %s128
      %p134 = scmp.eq.s32.totalorder %s15, 0
      %p135 = por %p133, %p134
      %p136 = scmp.ne.s32.totalorder %s125, %s128
      %p137 = scmp.eq.s32.totalorder %s20, 7
      %p138 = por %p136, %p137
      %p139 = scmp.ne.s32.totalorder %s128, %s129
      %p140 = scmp.eq.s32.totalorder %s20, 0
      %p141 = por %p139, %p140
      %p142 = scmp.ne.s32.totalorder %s128, %s129
      %p143 = scmp.eq.s32.totalorder %s21, 7
      %p144 = por %p142, %p143
      %p146 = scmp.ne.s32.totalorder %s129, %s145
      %p147 = scmp.eq.s32.totalorder %s21, 0
      %p148 = por %p146, %p147
      %s149 = ssub.s32 %s22, %s41
      %s150 = ssub.s32 %s24, %s33
      %s151 = sor.u32 %s149, %s150
      %p152 = scmp.eq.s32.totalorder %s151, 0
      %s154 = sadd.s32 %s153, 1
      %s155 = scalar_select %p152, %s153, %s154
      %p158 = pneg %p152
      %p159 = scmp.eq.s32.totalorder %s15, 7
      %p160 = por %p158, %p159
      %p161 = scmp.ne.s32.totalorder %s153, %s156
      %p162 = scmp.eq.s32.totalorder %s15, 0
      %p163 = por %p161, %p162
      %p164 = scmp.ne.s32.totalorder %s153, %s156
      %p165 = scmp.eq.s32.totalorder %s20, 7
      %p166 = por %p164, %p165
      %p167 = scmp.ne.s32.totalorder %s156, %s157
      %p168 = scmp.eq.s32.totalorder %s20, 0
      %p169 = por %p167, %p168
      %p170 = scmp.ne.s32.totalorder %s156, %s157
      %p171 = scmp.eq.s32.totalorder %s21, 7
      %p172 = por %p170, %p171
      %p174 = scmp.ne.s32.totalorder %s157, %s173
      %p175 = scmp.eq.s32.totalorder %s21, 0
      %p176 = por %p174, %p175
      %s177 = ssub.s32 %s22, %s41
      %s178 = ssub.s32 %s23, %s37
      %s179 = sor.u32 %s177, %s178
      %p180 = scmp.eq.s32.totalorder %s179, 0
      %s182 = sadd.s32 %s181, 1
      %s183 = scalar_select %p180, %s181, %s182
      %p186 = pneg %p180
      %p187 = scmp.eq.s32.totalorder %s15, 7
      %p188 = por %p186, %p187
      %p189 = scmp.ne.s32.totalorder %s181, %s184
      %p190 = scmp.eq.s32.totalorder %s15, 0
      %p191 = por %p189, %p190
      %p192 = scmp.ne.s32.totalorder %s181, %s184
      %p193 = scmp.eq.s32.totalorder %s20, 7
      %p194 = por %p192, %p193
      %p195 = scmp.ne.s32.totalorder %s184, %s185
      %p196 = scmp.eq.s32.totalorder %s20, 0
      %p197 = por %p195, %p196
      %p198 = scmp.ne.s32.totalorder %s184, %s185
      %p199 = scmp.eq.s32.totalorder %s21, 7
      %p200 = por %p198, %p199
      %p202 = scmp.ne.s32.totalorder %s185, %s201
      %p203 = scmp.eq.s32.totalorder %s21, 0
      %p204 = por %p202, %p203
      %s205 = ssub.s32 %s22, %s41
      %s206 = ssub.s32 %s23, %s37
      %s207 = sor.u32 %s205, %s206
      %p208 = scmp.eq.s32.totalorder %s207, 0
      %s210 = sadd.s32 %s209, 1
      %s211 = scalar_select %p208, %s209, %s210
      %p214 = pneg %p208
      %p215 = scmp.eq.s32.totalorder %s15, 7
      %p216 = por %p214, %p215
      %p217 = scmp.ne.s32.totalorder %s209, %s212
      %p218 = scmp.eq.s32.totalorder %s15, 0
      %p219 = por %p217, %p218
      %p220 = scmp.ne.s32.totalorder %s209, %s212
      %p221 = scmp.eq.s32.totalorder %s20, 7
      %p222 = por %p220, %p221
      %p223 = scmp.ne.s32.totalorder %s212, %s213
      %p224 = scmp.eq.s32.totalorder %s20, 0
      %p225 = por %p223, %p224
      %p226 = scmp.ne.s32.totalorder %s212, %s213
      %p227 = scmp.eq.s32.totalorder %s21, 7
      %p228 = por %p226, %p227
      %p230 = scmp.ne.s32.totalorder %s213, %s229
      %p231 = scmp.eq.s32.totalorder %s21, 0
      %p232 = por %p230, %p231
      %s233 = ssub.s32 %s22, %s41
      %p234 = scmp.eq.s32.totalorder %s233, 0
      %s236 = sadd.s32 %s235, 1
      %s237 = scalar_select %p234, %s235, %s236
      %p240 = pneg %p234
      %p241 = scmp.eq.s32.totalorder %s15, 7
      %p242 = por %p240, %p241
      %p243 = scmp.ne.s32.totalorder %s235, %s238
      %p244 = scmp.eq.s32.totalorder %s15, 0
      %p245 = por %p243, %p244
      %p246 = scmp.ne.s32.totalorder %s235, %s238
      %p247 = scmp.eq.s32.totalorder %s20, 7
      %p248 = por %p246, %p247
      %p249 = scmp.ne.s32.totalorder %s238, %s239
      %p250 = scmp.eq.s32.totalorder %s20, 0
      %p251 = por %p249, %p250
      %p252 = scmp.ne.s32.totalorder %s238, %s239
      %p253 = scmp.eq.s32.totalorder %s21, 7
      %p254 = por %p252, %p253
      %p256 = scmp.ne.s32.totalorder %s239, %s255
      %p257 = scmp.eq.s32.totalorder %s21, 0
      %p258 = por %p256, %p257
      %s259 = ssub.s32 %s22, %s41
      %s260 = ssub.s32 %s24, %s33
      %s261 = sor.u32 %s259, %s260
      %s262 = ssub.s32 %s23, %s37
      %s263 = sor.u32 %s261, %s262
      %p264 = scmp.eq.s32.totalorder %s263, 0
      %s266 = sadd.s32 %s265, 1
      %s267 = scalar_select %p264, %s265, %s266
      %p270 = pneg %p264
      %p271 = scmp.eq.s32.totalorder %s15, 7
      %p272 = por %p270, %p271
      %p273 = scmp.ne.s32.totalorder %s265, %s268
      %p274 = scmp.eq.s32.totalorder %s15, 0
      %p275 = por %p273, %p274
      %p276 = scmp.ne.s32.totalorder %s265, %s268
      %p277 = scmp.eq.s32.totalorder %s20, 7
      %p278 = por %p276, %p277
      %p279 = scmp.ne.s32.totalorder %s268, %s269
      %p280 = scmp.eq.s32.totalorder %s20, 0
      %p281 = por %p279, %p280
      %p282 = scmp.ne.s32.totalorder %s268, %s269
      %p283 = scmp.eq.s32.totalorder %s21, 7
      %p284 = por %p282, %p283
      %p286 = scmp.ne.s32.totalorder %s269, %s285
      %p287 = scmp.eq.s32.totalorder %s21, 0
      %p288 = por %p286, %p287
      %p289 = scmp.le.s32.totalorder 1, %s15
      %p290 = scmp.lt.s32.totalorder %s15, 9
      %p291 = pnand %p289, %p290
      %p292 = pneg %p291
      // Predicated region
      $region9: #{ipa_forward.1} parent=5 // pred_check
        _
      $region10: #{ipa_forward.1} parent=5 // pred_check_branch
        %294 = sbr.rel (%p291) target = $region12
      $region11: #{ipa_forward.1} parent=5 // pred_region
        %s295 = ssub.s32 %s15, 1
        // Predicated region
        $region13: #{ipa_forward.1} parent=11 // pred_check
          %p296 = pneg %p55
        $region14: #{ipa_forward.1} parent=11 // pred_check_branch
          %298 = sbr.rel (%p296) target = $region16
        $region15: #{ipa_forward.1} parent=11 // pred_region
          %s300 = ssub.s32 64, 64
          %301 = vsyncadd [#allocation3], %s300
          %s303 = sshll.u32 %s0, 4
          %s304 = int_to_ptr.vmem [resolvable:$true] %s303
          %306 = dma.vmem_to_smem %s304, 64, [#allocation2], [#allocation3]
        $region16: #{ipa_forward.1} parent=11 // pred_fallthru
          _
      $region12: #{ipa_forward.1} parent=5 // pred_fallthru
        _
      %p307 = scmp.lt.s32.totalorder %s15, 8
      // Predicated region
      $region17: #{ipa_forward.1} parent=5 // pred_check
        %p308 = pneg %p307
      $region18: #{ipa_forward.1} parent=5 // pred_check_branch
        %310 = sbr.rel (%p308) target = $region20
      $region19: #{ipa_forward.1} parent=5 // pred_region
        // Predicated region
        $region21: #{ipa_forward.1} parent=19 // pred_check
          %p311 = pneg %p79
        $region22: #{ipa_forward.1} parent=19 // pred_check_branch
          %313 = sbr.rel (%p311) target = $region24
        $region23: #{ipa_forward.1} parent=19 // pred_region
          %p314 = scmp.lt.s32.totalorder %s22, 1
          %s315 = scalar_select %p314, %s22, 1
          %p316 = scmp.lt.s32.totalorder %s24, 3
          %s317 = scalar_select %p316, %s24, 3
          %p318 = scmp.lt.s32.totalorder %s23, 0
          %s319 = scalar_select %p318, %s23, 0
          %s320 = sadd.s32 %s319, %s317
          %s321 = smul.addr %s315, 4
          %s322 = sadd.s32 %s320, %s321
          %s323 = smul.addr %s322, 8
          %s324 = scalar_lea.vmem %s1, %s323
        $region24: #{ipa_forward.1} parent=19 // pred_fallthru
          _
        // Predicated region
        $region25: #{ipa_forward.1} parent=19 // pred_check
          %p325 = pneg %p107
        $region26: #{ipa_forward.1} parent=19 // pred_check_branch
          %327 = sbr.rel (%p325) target = $region28
        $region27: #{ipa_forward.1} parent=19 // pred_region
          %p328 = scmp.lt.s32.totalorder %s22, 1
          %s329 = scalar_select %p328, %s22, 1
          %p330 = scmp.lt.s32.totalorder %s24, 3
          %s331 = scalar_select %p330, %s24, 3
          %s332 = smul.addr %s329, 4
          %s333 = sadd.s32 %s331, %s332
          %s334 = smul.addr %s333, 8
          %s335 = scalar_lea.vmem %s2, %s334
        $region28: #{ipa_forward.1} parent=19 // pred_fallthru
          _
        // Predicated region
        $region29: #{ipa_forward.1} parent=19 // pred_check
          %p336 = pneg %p135
        $region30: #{ipa_forward.1} parent=19 // pred_check_branch
          %338 = sbr.rel (%p336) target = $region32
        $region31: #{ipa_forward.1} parent=19 // pred_region
          %p339 = scmp.lt.s32.totalorder %s22, 1
          %s340 = scalar_select %p339, %s22, 1
          %p341 = scmp.lt.s32.totalorder %s24, 3
          %s342 = scalar_select %p341, %s24, 3
          %s343 = smul.addr %s340, 4
          %s344 = sadd.s32 %s342, %s343
          %s345 = scalar_lea.vmem %s3, %s344
        $region32: #{ipa_forward.1} parent=19 // pred_fallthru
          _
        // Predicated region
        $region33: #{ipa_forward.1} parent=19 // pred_check
          %p346 = pneg %p163
        $region34: #{ipa_forward.1} parent=19 // pred_check_branch
          %348 = sbr.rel (%p346) target = $region36
        $region35: #{ipa_forward.1} parent=19 // pred_region
          %p349 = scmp.lt.s32.totalorder %s22, 1
          %s350 = scalar_select %p349, %s22, 1
          %p351 = scmp.lt.s32.totalorder %s24, 3
          %s352 = scalar_select %p351, %s24, 3
          %s353 = smul.addr %s350, 4
          %s354 = sadd.s32 %s352, %s353
          %s355 = smul.addr %s354, 8
          %s356 = scalar_lea.vmem %s4, %s355
        $region36: #{ipa_forward.1} parent=19 // pred_fallthru
          _
        // Predicated region
        $region37: #{ipa_forward.1} parent=19 // pred_check
          %p357 = pneg %p191
        $region38: #{ipa_forward.1} parent=19 // pred_check_branch
          %359 = sbr.rel (%p357) target = $region40
        $region39: #{ipa_forward.1} parent=19 // pred_region
          %s360 = smul.u32 8, %s23
          %p361 = scmp.lt.s32.totalorder %s22, 1
          %s362 = scalar_select %p361, %s22, 1
          %p363 = scmp.lt.s32.totalorder %s360, 7
          %s364 = scalar_select %p363, %s360, 7
          %s365 = smul.addr %s362, 8
          %s366 = sadd.s32 %s364, %s365
          %s367 = smul.addr %s366, 4
          %s368 = scalar_lea.vmem %s5, %s367
          %s369 = smul.u32 8, %s23
        $region40: #{ipa_forward.1} parent=19 // pred_fallthru
          _
        // Predicated region
        $region41: #{ipa_forward.1} parent=19 // pred_check
          %p370 = pneg %p219
        $region42: #{ipa_forward.1} parent=19 // pred_check_branch
          %372 = sbr.rel (%p370) target = $region44
        $region43: #{ipa_forward.1} parent=19 // pred_region
          %p373 = scmp.lt.s32.totalorder %s22, 1
          %s374 = scalar_select %p373, %s22, 1
          %p375 = scmp.lt.s32.totalorder %s23, 0
          %s376 = scalar_select %p375, %s23, 0
          %s377 = sadd.s32 %s376, %s374
          %s378 = smul.addr %s377, 8
          %s379 = scalar_lea.vmem %s6, %s378
        $region44: #{ipa_forward.1} parent=19 // pred_fallthru
          _
        // Predicated region
        $region45: #{ipa_forward.1} parent=19 // pred_check
          %p380 = pneg %p245
        $region46: #{ipa_forward.1} parent=19 // pred_check_branch
          %382 = sbr.rel (%p380) target = $region48
        $region47: #{ipa_forward.1} parent=19 // pred_region
          %p383 = scmp.lt.s32.totalorder %s22, 1
          %s384 = scalar_select %p383, %s22, 1
          %s385 = scalar_lea.vmem %s7, %s384
        $region48: #{ipa_forward.1} parent=19 // pred_fallthru
          _
      $region20: #{ipa_forward.1} parent=5 // pred_fallthru
        _
      %p386 = scmp.le.s32.totalorder 1, %s15
      %p387 = scmp.lt.s32.totalorder %s15, 9
      %p388 = pnand %p386, %p387
      %p389 = pneg %p388
      // Predicated region
      $region49: #{ipa_forward.1} parent=5 // pred_check
        _
      $region50: #{ipa_forward.1} parent=5 // pred_check_branch
        %391 = sbr.rel (%p388) target = $region52
      $region51: #{ipa_forward.1} parent=5 // pred_region
        %s392 = ssub.s32 %s15, 1
        // Predicated region
        $region53: #{ipa_forward.1} parent=51 // pred_check
          %p393 = pneg %p55
        $region54: #{ipa_forward.1} parent=51 // pred_check_branch
          %395 = sbr.rel (%p393) target = $region56
        $region55: #{ipa_forward.1} parent=51 // pred_region
          %396 = dma.done [#allocation3], 64
        $region56: #{ipa_forward.1} parent=51 // pred_fallthru
          _
        %397 = sfence
        %p398 = pneg %p55
        %p399 = pneg %p52
        %p400 = scmp.lt.s32.totalorder %s25, 1
        %s401 = scalar_select %p400, %s25, 1
        %p402 = scmp.lt.s32.totalorder %s27, 3
        %s403 = scalar_select %p402, %s27, 3
        %p404 = scmp.lt.s32.totalorder %s26, 0
        %s405 = scalar_select %p404, %s26, 0
        %s406 = sadd.s32 %s405, %s403
        %s407 = smul.addr %s401, 4
        %s408 = sadd.s32 %s406, %s407
        %s409 = smul.addr %s408, 8
        %s410 = scalar_lea.vmem %s1, %s409
        %p411 = pneg %p85
        %p412 = pneg %p82
        %p413 = scmp.lt.s32.totalorder %s25, 1
        %s414 = scalar_select %p413, %s25, 1
        %p415 = scmp.lt.s32.totalorder %s27, 3
        %s416 = scalar_select %p415, %s27, 3
        %s417 = smul.addr %s414, 4
        %s418 = sadd.s32 %s416, %s417
        %s419 = smul.addr %s418, 8
        %s420 = scalar_lea.vmem %s2, %s419
        %p421 = pneg %p113
        %p422 = pneg %p110
        %p423 = scmp.lt.s32.totalorder %s25, 1
        %s424 = scalar_select %p423, %s25, 1
        %p425 = scmp.lt.s32.totalorder %s27, 3
        %s426 = scalar_select %p425, %s27, 3
        %s427 = smul.addr %s424, 4
        %s428 = sadd.s32 %s426, %s427
        %s429 = scalar_lea.vmem %s3, %s428
        %p430 = pneg %p141
        %p431 = pneg %p138
        %p432 = scmp.lt.s32.totalorder %s25, 1
        %s433 = scalar_select %p432, %s25, 1
        %p434 = scmp.lt.s32.totalorder %s27, 3
        %s435 = scalar_select %p434, %s27, 3
        %s436 = smul.addr %s433, 4
        %s437 = sadd.s32 %s435, %s436
        %s438 = smul.addr %s437, 8
        %s439 = scalar_lea.vmem %s4, %s438
        %p440 = pneg %p169
        %p441 = pneg %p166
        %s442 = smul.u32 8, %s26
        %p443 = scmp.lt.s32.totalorder %s25, 1
        %s444 = scalar_select %p443, %s25, 1
        %p445 = scmp.lt.s32.totalorder %s442, 7
        %s446 = scalar_select %p445, %s442, 7
        %s447 = smul.addr %s444, 8
        %s448 = sadd.s32 %s446, %s447
        %s449 = smul.addr %s448, 4
        %s450 = scalar_lea.vmem %s5, %s449
        %p451 = pneg %p197
        %p452 = pneg %p194
        %p453 = scmp.lt.s32.totalorder %s25, 1
        %s454 = scalar_select %p453, %s25, 1
        %p455 = scmp.lt.s32.totalorder %s26, 0
        %s456 = scalar_select %p455, %s26, 0
        %s457 = sadd.s32 %s456, %s454
        %s458 = smul.addr %s457, 8
        %s459 = scalar_lea.vmem %s6, %s458
        %p460 = pneg %p225
        %p461 = pneg %p222
        %p462 = scmp.lt.s32.totalorder %s25, 1
        %s463 = scalar_select %p462, %s25, 1
        %s464 = scalar_lea.vmem %s7, %s463
        %p465 = pneg %p251
        %p466 = pneg %p248
        %p467 = pneg %p281
        %p468 = pneg %p278
        %p469 = scmp.lt.s32.totalorder %s25, 1
        %s470 = scalar_select %p469, %s25, 1
        %p471 = scmp.lt.s32.totalorder %s27, 3
        %s472 = scalar_select %p471, %s27, 3
        %p473 = scmp.lt.s32.totalorder %s26, 0
        %s474 = scalar_select %p473, %s26, 0
        %s475 = sadd.s32 %s474, %s472
        %s476 = smul.addr %s470, 4
        %s477 = sadd.s32 %s475, %s476
        %s478 = smul.addr %s477, 8
        %s479 = scalar_lea.vmem %s8, %s478
        %p480 = scmp.lt.s32.totalorder %s25, 1
        %s481 = scalar_select %p480, %s25, 1
        %p482 = scmp.lt.s32.totalorder %s27, 3
        %s483 = scalar_select %p482, %s27, 3
        %p484 = scmp.lt.s32.totalorder %s26, 0
        %s485 = scalar_select %p484, %s26, 0
        %s486 = sadd.s32 %s485, %s483
        %s487 = smul.addr %s481, 4
        %s488 = sadd.s32 %s486, %s487
        %s489 = smul.addr %s488, 8
        %s490 = scalar_lea.vmem %s1, %s489
        %p491 = scmp.lt.s32.totalorder %s25, 1
        %s492 = scalar_select %p491, %s25, 1
        %p493 = scmp.lt.s32.totalorder %s27, 3
        %s494 = scalar_select %p493, %s27, 3
        %s495 = smul.addr %s492, 4
        %s496 = sadd.s32 %s494, %s495
        %s497 = smul.addr %s496, 8
        %s498 = scalar_lea.vmem %s2, %s497
        %p499 = scmp.lt.s32.totalorder %s25, 1
        %s500 = scalar_select %p499, %s25, 1
        %p501 = scmp.lt.s32.totalorder %s27, 3
        %s502 = scalar_select %p501, %s27, 3
        %s503 = smul.addr %s500, 4
        %s504 = sadd.s32 %s502, %s503
        %s505 = scalar_lea.vmem %s3, %s504
        %p506 = scmp.lt.s32.totalorder %s25, 1
        %s507 = scalar_select %p506, %s25, 1
        %p508 = scmp.lt.s32.totalorder %s27, 3
        %s509 = scalar_select %p508, %s27, 3
        %s510 = smul.addr %s507, 4
        %s511 = sadd.s32 %s509, %s510
        %s512 = smul.addr %s511, 8
        %s513 = scalar_lea.vmem %s4, %s512
        %s514 = smul.u32 8, %s26
        %p515 = scmp.lt.s32.totalorder %s25, 1
        %s516 = scalar_select %p515, %s25, 1
        %p517 = scmp.lt.s32.totalorder %s514, 7
        %s518 = scalar_select %p517, %s514, 7
        %s519 = smul.addr %s516, 8
        %s520 = sadd.s32 %s518, %s519
        %s521 = smul.addr %s520, 4
        %s522 = scalar_lea.vmem %s5, %s521
        %s523 = smul.u32 8, %s26
        %p524 = scmp.lt.s32.totalorder %s25, 1
        %s525 = scalar_select %p524, %s25, 1
        %p526 = scmp.lt.s32.totalorder %s26, 0
        %s527 = scalar_select %p526, %s26, 0
        %s528 = sadd.s32 %s527, %s525
        %s529 = smul.addr %s528, 8
        %s530 = scalar_lea.vmem %s6, %s529
        %p531 = scmp.lt.s32.totalorder %s25, 1
        %s532 = scalar_select %p531, %s25, 1
        %s533 = scalar_lea.vmem %s7, %s532
        %p534 = scmp.lt.s32.totalorder %s25, 1
        %s535 = scalar_select %p534, %s25, 1
        %p536 = scmp.lt.s32.totalorder %s27, 3
        %s537 = scalar_select %p536, %s27, 3
        %p538 = scmp.lt.s32.totalorder %s26, 0
        %s539 = scalar_select %p538, %s26, 0
        %s540 = sadd.s32 %s539, %s537
        %s541 = smul.addr %s535, 4
        %s542 = sadd.s32 %s540, %s541
        %s543 = smul.addr %s542, 8
        %s544 = scalar_lea.vmem %s8, %s543
        %v545 = vld [vmem:[%s490] sm:$0xff]
        %v546 = vld [vmem:[%s498] sm:$0xff]
        %s547 = smul.u32 %s27, 128
        %s548 = sld [smem:[#allocation2 + %s547]]
        %v549 = vld [vmem:[%s522] sm:$0x1]
        %v550 = vld [vmem:[%s522 + $0x4] sm:$0x1]
        %v551 = vld [vmem:[%s522 + $0x8] sm:$0x1]
        %v552 = vld [vmem:[%s522 + $0xc] sm:$0x1]
        %v553 = vld [vmem:[%s522 + $0x10] sm:$0x1]
        %v554 = vld [vmem:[%s522 + $0x14] sm:$0x1]
        %v555 = vld [vmem:[%s522 + $0x18] sm:$0x1]
        %v556 = vld [vmem:[%s522 + $0x1c] sm:$0x1]
        %v557 = vunpack.c.l.bf16 %v549
        %v558 = vunpack.c.l.bf16 %v550
        %v559 = vunpack.c.l.bf16 %v551
        %v560 = vunpack.c.l.bf16 %v552
        %v561 = vunpack.c.l.bf16 %v553
        %v562 = vunpack.c.l.bf16 %v554
        %v563 = vunpack.c.l.bf16 %v555
        %v564 = vunpack.c.l.bf16 %v556
        %v565 = vstv %s548
        %v566 = vmul.f32 %v565, %v557
        %v567 = vmul.f32 %v565, %v558
        %v568 = vmul.f32 %v565, %v559
        %v569 = vmul.f32 %v565, %v560
        %v570 = vmul.f32 %v565, %v561
        %v571 = vmul.f32 %v565, %v562
        %v572 = vmul.f32 %v565, %v563
        %v573 = vmul.f32 %v565, %v564
        %v582 = vrot.slane %v567, 7
        %vm583 = vcmask 1041409
        %v584 = vsel %vm583, %v582, %v566
        %v585 = vrot.slane %v568, 6
        %vm586 = vcmask 1042434
        %v587 = vsel %vm586, %v585, %v584
        %v588 = vrot.slane %v569, 5
        %vm589 = vcmask 1043459
        %v590 = vsel %vm589, %v588, %v587
        %v591 = vrot.slane %v570, 4
        %vm592 = vcmask 1044484
        %v593 = vsel %vm592, %v591, %v590
        %v594 = vrot.slane %v571, 3
        %vm595 = vcmask 1045509
        %v596 = vsel %vm595, %v594, %v593
        %v597 = vrot.slane %v572, 2
        %vm598 = vcmask 1046534
        %v599 = vsel %vm598, %v597, %v596
        %v600 = vrot.slane %v573, 1
        %vm601 = vcmask 1047559
        %v602 = vsel %vm601, %v600, %v599
        %vm604 = vcmask 228352
        %v606 = vsel %vm604, %v545, 0
        %v609 = vsel %vm604, %v546, 0
        %611 = vmatprep.subr.mxu0 0.0
        %612 = vmatpush1.xpose.msra.mxu0 0.0
        %613 = vmatprep.subr.mxu0 0.0
        %614 = vmatpush1.xpose.msra.mxu0 0.0
        %615 = vmatprep.subr.mxu0 0.0
        %616 = vmatpush1.xpose.msra.mxu0 0.0
        %617 = vmatprep.subr.mxu0 0.0
        %618 = vmatpush1.xpose.msra.mxu0 0.0
        %619 = vmatprep.subr.mxu0 0.0
        %620 = vmatpush1.xpose.msra.mxu0 0.0
        %621 = vmatprep.subr.mxu0 0.0
        %622 = vmatpush1.xpose.msra.mxu0 0.0
        %623 = vmatprep.subr.mxu0 0.0
        %624 = vmatpush1.xpose.msra.mxu0 0.0
        %625 = vmatprep.subr.mxu0 0.0
        %626 = vmatpush1.xpose.msra.mxu0 0.0
        %627 = vmatprep.subr.mxu0 0.0
        %628 = vmatpush1.xpose.msra.mxu0 0.0
        %629 = vmatprep.subr.mxu0 0.0
        %630 = vmatpush1.xpose.msra.mxu0 0.0
        %631 = vmatprep.subr.mxu0 0.0
        %632 = vmatpush1.xpose.msra.mxu0 0.0
        %633 = vmatprep.subr.mxu0 0.0
        %634 = vmatpush1.xpose.msra.mxu0 0.0
        %635 = vmatprep.subr.mxu0 0.0
        %636 = vmatpush1.xpose.msra.mxu0 0.0
        %637 = vmatprep.subr.mxu0 0.0
        %638 = vmatpush1.xpose.msra.mxu0 0.0
        %639 = vmatprep.subr.mxu0 0.0
        %640 = vmatpush1.xpose.msra.mxu0 0.0
        %641 = vmatprep.subr.mxu0 0.0
        %642 = vmatpush1.xpose.msra.mxu0 %v609
        %643 = vmatprep.subr.mxu0 0.0
        %644 = vmatpush2.xpose.msra.mxu0 0.0
        %645 = vmatprep.subr.mxu0 0.0
        %646 = vmatpush2.xpose.msra.mxu0 0.0
        %647 = vmatprep.subr.mxu0 0.0
        %648 = vmatpush2.xpose.msra.mxu0 0.0
        %649 = vmatprep.subr.mxu0 0.0
        %650 = vmatpush2.xpose.msra.mxu0 0.0
        %651 = vmatprep.subr.mxu0 0.0
        %652 = vmatpush2.xpose.msra.mxu0 0.0
        %653 = vmatprep.subr.mxu0 0.0
        %654 = vmatpush2.xpose.msra.mxu0 0.0
        %655 = vmatprep.subr.mxu0 0.0
        %656 = vmatpush2.xpose.msra.mxu0 0.0
        %657 = vmatprep.subr.mxu0 0.0
        %658 = vmatpush2.xpose.msra.mxu0 0.0
        %659 = vmatprep.subr.mxu0 0.0
        %660 = vmatpush2.xpose.msra.mxu0 0.0
        %661 = vmatprep.subr.mxu0 0.0
        %662 = vmatpush2.xpose.msra.mxu0 0.0
        %663 = vmatprep.subr.mxu0 0.0
        %664 = vmatpush2.xpose.msra.mxu0 0.0
        %665 = vmatprep.subr.mxu0 0.0
        %666 = vmatpush2.xpose.msra.mxu0 0.0
        %667 = vmatprep.subr.mxu0 0.0
        %668 = vmatpush2.xpose.msra.mxu0 0.0
        %669 = vmatprep.subr.mxu0 0.0
        %670 = vmatpush2.xpose.msra.mxu0 0.0
        %671 = vmatprep.subr.mxu0 0.0
        %672 = vmatpush2.xpose.msra.mxu0 0.0
        %673 = vmatprep.subr.mxu0 0.0
        %674 = vmatpush2.xpose.msra.mxu0 0.0
        %675 = vmatprep.mubr.f32.mxu0 0.0
        %676 = vmatmul.mubr.f32.gmra.mxu0 %v606
        %v677 = vpop.f32.mrf.mxu0
        %v678 = vadd.f32 %v602, %v677
        %v679 = vpop.f32.mrf.mxu0
        %680 = vdwg.mxu0
        %s681 = sadd.s32 %s547, 1
        %s682 = sld [smem:[#allocation2 + %s681]]
        %v683 = vstv %s682
        %v684 = vmul.f32 %v683, %v557
        %v685 = vmul.f32 %v683, %v558
        %v686 = vmul.f32 %v683, %v559
        %v687 = vmul.f32 %v683, %v560
        %v688 = vmul.f32 %v683, %v561
        %v689 = vmul.f32 %v683, %v562
        %v690 = vmul.f32 %v683, %v563
        %v691 = vmul.f32 %v683, %v564
        %v700 = vrot.slane %v684, 1
        %v701 = vsel %vm583, %v685, %v700
        %v702 = vrot.slane %v686, 7
        %v703 = vsel %vm586, %v702, %v701
        %v704 = vrot.slane %v687, 6
        %v705 = vsel %vm589, %v704, %v703
        %v706 = vrot.slane %v688, 5
        %v707 = vsel %vm592, %v706, %v705
        %v708 = vrot.slane %v689, 4
        %v709 = vsel %vm595, %v708, %v707
        %v710 = vrot.slane %v690, 3
        %v711 = vsel %vm598, %v710, %v709
        %v712 = vrot.slane %v691, 2
        %v713 = vsel %vm601, %v712, %v711
        %v715 = vadd.f32 %v678, %v713
        %s716 = sadd.s32 %s547, 2
        %s717 = sld [smem:[#allocation2 + %s716]]
        %v718 = vld [vmem:[%s522] sm:$0x2]
        %v719 = vld [vmem:[%s522 + $0x4] sm:$0x2]
        %v720 = vld [vmem:[%s522 + $0x8] sm:$0x2]
        %v721 = vld [vmem:[%s522 + $0xc] sm:$0x2]
        %v722 = vld [vmem:[%s522 + $0x10] sm:$0x2]
        %v723 = vld [vmem:[%s522 + $0x14] sm:$0x2]
        %v724 = vld [vmem:[%s522 + $0x18] sm:$0x2]
        %v725 = vld [vmem:[%s522 + $0x1c] sm:$0x2]
        %v726 = vunpack.c.l.bf16 %v718
        %v727 = vunpack.c.l.bf16 %v719
        %v728 = vunpack.c.l.bf16 %v720
        %v729 = vunpack.c.l.bf16 %v721
        %v730 = vunpack.c.l.bf16 %v722
        %v731 = vunpack.c.l.bf16 %v723
        %v732 = vunpack.c.l.bf16 %v724
        %v733 = vunpack.c.l.bf16 %v725
        %v734 = vstv %s717
        %v735 = vmul.f32 %v734, %v726
        %v736 = vmul.f32 %v734, %v727
        %v737 = vmul.f32 %v734, %v728
        %v738 = vmul.f32 %v734, %v729
        %v739 = vmul.f32 %v734, %v730
        %v740 = vmul.f32 %v734, %v731
        %v741 = vmul.f32 %v734, %v732
        %v742 = vmul.f32 %v734, %v733
        %v751 = vrot.slane %v735, 2
        %v752 = vrot.slane %v736, 1
        %v753 = vsel %vm583, %v752, %v751
        %v754 = vsel %vm586, %v737, %v753
        %v755 = vrot.slane %v738, 7
        %v756 = vsel %vm589, %v755, %v754
        %v757 = vrot.slane %v739, 6
        %v758 = vsel %vm592, %v757, %v756
        %v759 = vrot.slane %v740, 5
        %v760 = vsel %vm595, %v759, %v758
        %v761 = vrot.slane %v741, 4
        %v762 = vsel %vm598, %v761, %v760
        %v763 = vrot.slane %v742, 3
        %v764 = vsel %vm601, %v763, %v762
        %v766 = vadd.f32 %v715, %v764
        %s767 = sadd.s32 %s547, 3
        %s768 = sld [smem:[#allocation2 + %s767]]
        %v769 = vstv %s768
        %v770 = vmul.f32 %v769, %v726
        %v771 = vmul.f32 %v769, %v727
        %v772 = vmul.f32 %v769, %v728
        %v773 = vmul.f32 %v769, %v729
        %v774 = vmul.f32 %v769, %v730
        %v775 = vmul.f32 %v769, %v731
        %v776 = vmul.f32 %v769, %v732
        %v777 = vmul.f32 %v769, %v733
        %v786 = vrot.slane %v770, 3
        %v787 = vrot.slane %v771, 2
        %v788 = vsel %vm583, %v787, %v786
        %v789 = vrot.slane %v772, 1
        %v790 = vsel %vm586, %v789, %v788
        %v791 = vsel %vm589, %v773, %v790
        %v792 = vrot.slane %v774, 7
        %v793 = vsel %vm592, %v792, %v791
        %v794 = vrot.slane %v775, 6
        %v795 = vsel %vm595, %v794, %v793
        %v796 = vrot.slane %v776, 5
        %v797 = vsel %vm598, %v796, %v795
        %v798 = vrot.slane %v777, 4
        %v799 = vsel %vm601, %v798, %v797
        %v801 = vadd.f32 %v766, %v799
        %s802 = sadd.s32 %s547, 4
        %s803 = sld [smem:[#allocation2 + %s802]]
        %v804 = vld [vmem:[%s522] sm:$0x4]
        %v805 = vld [vmem:[%s522 + $0x4] sm:$0x4]
        %v806 = vld [vmem:[%s522 + $0x8] sm:$0x4]
        %v807 = vld [vmem:[%s522 + $0xc] sm:$0x4]
        %v808 = vld [vmem:[%s522 + $0x10] sm:$0x4]
        %v809 = vld [vmem:[%s522 + $0x14] sm:$0x4]
        %v810 = vld [vmem:[%s522 + $0x18] sm:$0x4]
        %v811 = vld [vmem:[%s522 + $0x1c] sm:$0x4]
        %v812 = vunpack.c.l.bf16 %v804
        %v813 = vunpack.c.l.bf16 %v805
        %v814 = vunpack.c.l.bf16 %v806
        %v815 = vunpack.c.l.bf16 %v807
        %v816 = vunpack.c.l.bf16 %v808
        %v817 = vunpack.c.l.bf16 %v809
        %v818 = vunpack.c.l.bf16 %v810
        %v819 = vunpack.c.l.bf16 %v811
        %v820 = vstv %s803
        %v821 = vmul.f32 %v820, %v812
        %v822 = vmul.f32 %v820, %v813
        %v823 = vmul.f32 %v820, %v814
        %v824 = vmul.f32 %v820, %v815
        %v825 = vmul.f32 %v820, %v816
        %v826 = vmul.f32 %v820, %v817
        %v827 = vmul.f32 %v820, %v818
        %v828 = vmul.f32 %v820, %v819
        %v837 = vrot.slane %v821, 4
        %v838 = vrot.slane %v822, 3
        %v839 = vsel %vm583, %v838, %v837
        %v840 = vrot.slane %v823, 2
        %v841 = vsel %vm586, %v840, %v839
        %v842 = vrot.slane %v824, 1
        %v843 = vsel %vm589, %v842, %v841
        %v844 = vsel %vm592, %v825, %v843
        %v845 = vrot.slane %v826, 7
        %v846 = vsel %vm595, %v845, %v844
        %v847 = vrot.slane %v827, 6
        %v848 = vsel %vm598, %v847, %v846
        %v849 = vrot.slane %v828, 5
        %v850 = vsel %vm601, %v849, %v848
        %v852 = vadd.f32 %v801, %v850
        %s853 = sadd.s32 %s547, 5
        %s854 = sld [smem:[#allocation2 + %s853]]
        %v855 = vstv %s854
        %v856 = vmul.f32 %v855, %v812
        %v857 = vmul.f32 %v855, %v813
        %v858 = vmul.f32 %v855, %v814
        %v859 = vmul.f32 %v855, %v815
        %v860 = vmul.f32 %v855, %v816
        %v861 = vmul.f32 %v855, %v817
        %v862 = vmul.f32 %v855, %v818
        %v863 = vmul.f32 %v855, %v819
        %v872 = vrot.slane %v856, 5
        %v873 = vrot.slane %v857, 4
        %v874 = vsel %vm583, %v873, %v872
        %v875 = vrot.slane %v858, 3
        %v876 = vsel %vm586, %v875, %v874
        %v877 = vrot.slane %v859, 2
        %v878 = vsel %vm589, %v877, %v876
        %v879 = vrot.slane %v860, 1
        %v880 = vsel %vm592, %v879, %v878
        %v881 = vsel %vm595, %v861, %v880
        %v882 = vrot.slane %v862, 7
        %v883 = vsel %vm598, %v882, %v881
        %v884 = vrot.slane %v863, 6
        %v885 = vsel %vm601, %v884, %v883
        %v887 = vadd.f32 %v852, %v885
        %s888 = sadd.s32 %s547, 6
        %s889 = sld [smem:[#allocation2 + %s888]]
        %v890 = vld [vmem:[%s522] sm:$0x8]
        %v891 = vld [vmem:[%s522 + $0x4] sm:$0x8]
        %v892 = vld [vmem:[%s522 + $0x8] sm:$0x8]
        %v893 = vld [vmem:[%s522 + $0xc] sm:$0x8]
        %v894 = vld [vmem:[%s522 + $0x10] sm:$0x8]
        %v895 = vld [vmem:[%s522 + $0x14] sm:$0x8]
        %v896 = vld [vmem:[%s522 + $0x18] sm:$0x8]
        %v897 = vld [vmem:[%s522 + $0x1c] sm:$0x8]
        %v898 = vunpack.c.l.bf16 %v890
        %v899 = vunpack.c.l.bf16 %v891
        %v900 = vunpack.c.l.bf16 %v892
        %v901 = vunpack.c.l.bf16 %v893
        %v902 = vunpack.c.l.bf16 %v894
        %v903 = vunpack.c.l.bf16 %v895
        %v904 = vunpack.c.l.bf16 %v896
        %v905 = vunpack.c.l.bf16 %v897
        %v906 = vstv %s889
        %v907 = vmul.f32 %v906, %v898
        %v908 = vmul.f32 %v906, %v899
        %v909 = vmul.f32 %v906, %v900
        %v910 = vmul.f32 %v906, %v901
        %v911 = vmul.f32 %v906, %v902
        %v912 = vmul.f32 %v906, %v903
        %v913 = vmul.f32 %v906, %v904
        %v914 = vmul.f32 %v906, %v905
        %v923 = vrot.slane %v907, 6
        %v924 = vrot.slane %v908, 5
        %v925 = vsel %vm583, %v924, %v923
        %v926 = vrot.slane %v909, 4
        %v927 = vsel %vm586, %v926, %v925
        %v928 = vrot.slane %v910, 3
        %v929 = vsel %vm589, %v928, %v927
        %v930 = vrot.slane %v911, 2
        %v931 = vsel %vm592, %v930, %v929
        %v932 = vrot.slane %v912, 1
        %v933 = vsel %vm595, %v932, %v931
        %v934 = vsel %vm598, %v913, %v933
        %v935 = vrot.slane %v914, 7
        %v936 = vsel %vm601, %v935, %v934
        %v938 = vadd.f32 %v887, %v936
        %s939 = sadd.s32 %s547, 7
        %s940 = sld [smem:[#allocation2 + %s939]]
        %v941 = vstv %s940
        %v942 = vmul.f32 %v941, %v898
        %v943 = vmul.f32 %v941, %v899
        %v944 = vmul.f32 %v941, %v900
        %v945 = vmul.f32 %v941, %v901
        %v946 = vmul.f32 %v941, %v902
        %v947 = vmul.f32 %v941, %v903
        %v948 = vmul.f32 %v941, %v904
        %v949 = vmul.f32 %v941, %v905
        %v958 = vrot.slane %v942, 7
        %v959 = vrot.slane %v943, 6
        %v960 = vsel %vm583, %v959, %v958
        %v961 = vrot.slane %v944, 5
        %v962 = vsel %vm586, %v961, %v960
        %v963 = vrot.slane %v945, 4
        %v964 = vsel %vm589, %v963, %v962
        %v965 = vrot.slane %v946, 3
        %v966 = vsel %vm592, %v965, %v964
        %v967 = vrot.slane %v947, 2
        %v968 = vsel %vm595, %v967, %v966
        %v969 = vrot.slane %v948, 1
        %v970 = vsel %vm598, %v969, %v968
        %v971 = vsel %vm601, %v949, %v970
        %v973 = vadd.f32 %v938, %v971
        %v974 = vld [vmem:[%s505] sm:$0x1]
        %v976 = vlaneseq
        %v977 = vshrl.u32 %v976, 7
        %v978 = vsub.s32 0, %v977
        %v979 = vrot.slane %v974, %v978
        %v981 = vadd.f32 %v973, %v979
        %v982 = vld [vmem:[%s530] sm:$0xff]
        %v983 = vld [vmem:[%s533] sm:$0x1]
        %985 = vset.pattern.permute.xlu0 0
        %986 = vperm.xlu0 %985, %v982
        %v987 = vpop.permute.xlu0 %986
        %v990 = vlaneseq
        %v991 = vshrl.u32 %v990, 7
        %v992 = vsub.s32 0, %v991
        %v993 = vrot.slane %v983, %v992
        %v995 = vmul.f32 %v987, %v993
        %v996 = vsub.f32 %v995, 1.0
        %v997 = vmul.f32 %v996, 100000.0
        %v998 = vadd.f32 %v981, %v997
        %vm999 = vcmask 64512
        %v1000 = vsel %vm999, %v998, -inf
        %1001 = vmax.xlane.f32.xlu0 %v1000
        %v1002 = vpop.xlane.xlu0 %1001
        %v1003 = vsub.f32 %v998, %v1002
        %v1004 = vmul.f32 %v1003, 1.442695
        %v1005 = vpow.pop %v1004
        %v1006 = vsel %vm999, %v1005, 0.0
        %1007 = vadd.xlane.f32.xlu0 %v1006
        %v1008 = vpop.xlane.xlu0 %1007
        %v1009 = vrcp.pop %v1008
        %v1010 = vld [vmem:[%s513] sm:$0xff]
        %v1012 = vsel %vm999, %v1005, 0
        %1014 = vmatprep.subr.mxu0 0.0
        %1015 = vmatpush1.msra.mxu0 0.0
        %1016 = vmatprep.subr.mxu0 0.0
        %1017 = vmatpush1.msra.mxu0 0.0
        %1018 = vmatprep.subr.mxu0 0.0
        %1019 = vmatpush1.msra.mxu0 0.0
        %1020 = vmatprep.subr.mxu0 0.0
        %1021 = vmatpush1.msra.mxu0 0.0
        %1022 = vmatprep.subr.mxu0 0.0
        %1023 = vmatpush1.msra.mxu0 0.0
        %1024 = vmatprep.subr.mxu0 0.0
        %1025 = vmatpush1.msra.mxu0 0.0
        %1026 = vmatprep.subr.mxu0 0.0
        %1027 = vmatpush1.msra.mxu0 0.0
        %1028 = vmatprep.subr.mxu0 0.0
        %1029 = vmatpush1.msra.mxu0 0.0
        %1030 = vmatprep.subr.mxu0 0.0
        %1031 = vmatpush1.msra.mxu0 0.0
        %1032 = vmatprep.subr.mxu0 0.0
        %1033 = vmatpush1.msra.mxu0 0.0
        %1034 = vmatprep.subr.mxu0 0.0
        %1035 = vmatpush1.msra.mxu0 0.0
        %1036 = vmatprep.subr.mxu0 0.0
        %1037 = vmatpush1.msra.mxu0 0.0
        %1038 = vmatprep.subr.mxu0 0.0
        %1039 = vmatpush1.msra.mxu0 0.0
        %1040 = vmatprep.subr.mxu0 0.0
        %1041 = vmatpush1.msra.mxu0 0.0
        %1042 = vmatprep.subr.mxu0 0.0
        %1043 = vmatpush1.msra.mxu0 0.0
        %1044 = vmatprep.subr.mxu0 0.0
        %1045 = vmatpush1.msra.mxu0 %v1010
        %1046 = vmatprep.subr.mxu0 0.0
        %1047 = vmatpush2.msra.mxu0 0.0
        %1048 = vmatprep.subr.mxu0 0.0
        %1049 = vmatpush2.msra.mxu0 0.0
        %1050 = vmatprep.subr.mxu0 0.0
        %1051 = vmatpush2.msra.mxu0 0.0
        %1052 = vmatprep.subr.mxu0 0.0
        %1053 = vmatpush2.msra.mxu0 0.0
        %1054 = vmatprep.subr.mxu0 0.0
        %1055 = vmatpush2.msra.mxu0 0.0
        %1056 = vmatprep.subr.mxu0 0.0
        %1057 = vmatpush2.msra.mxu0 0.0
        %1058 = vmatprep.subr.mxu0 0.0
        %1059 = vmatpush2.msra.mxu0 0.0
        %1060 = vmatprep.subr.mxu0 0.0
        %1061 = vmatpush2.msra.mxu0 0.0
        %1062 = vmatprep.subr.mxu0 0.0
        %1063 = vmatpush2.msra.mxu0 0.0
        %1064 = vmatprep.subr.mxu0 0.0
        %1065 = vmatpush2.msra.mxu0 0.0
        %1066 = vmatprep.subr.mxu0 0.0
        %1067 = vmatpush2.msra.mxu0 0.0
        %1068 = vmatprep.subr.mxu0 0.0
        %1069 = vmatpush2.msra.mxu0 0.0
        %1070 = vmatprep.subr.mxu0 0.0
        %1071 = vmatpush2.msra.mxu0 0.0
        %1072 = vmatprep.subr.mxu0 0.0
        %1073 = vmatpush2.msra.mxu0 0.0
        %1074 = vmatprep.subr.mxu0 0.0
        %1075 = vmatpush2.msra.mxu0 0.0
        %1076 = vmatprep.subr.mxu0 0.0
        %1077 = vmatpush2.msra.mxu0 0.0
        %1078 = vmatprep.mubr.f32.mxu0 0.0
        %1079 = vmatmul.mubr.f32.gmra.mxu0 %v1012
        %v1080 = vpop.f32.mrf.mxu0
        %v1081 = vadd.f32 0.0, %v1080
        %v1082 = vpop.f32.mrf.mxu0
        %1083 = vdwg.mxu0
        %v1084 = vmul.f32 %v1081, %v1009
        %vm1085 = vcmask 326656
        %1086 = vst.msk [vmem:[%s544] sm:$0xff] %vm1085, %v1084
        %v1087 = vld [vmem:[%s522] sm:$0x1]
        %v1088 = vld [vmem:[%s522 + $0x4] sm:$0x1]
        %v1089 = vld [vmem:[%s522 + $0x8] sm:$0x1]
        %v1090 = vld [vmem:[%s522 + $0xc] sm:$0x1]
        %v1091 = vld [vmem:[%s522 + $0x10] sm:$0x1]
        %v1092 = vld [vmem:[%s522 + $0x14] sm:$0x1]
        %v1093 = vld [vmem:[%s522 + $0x18] sm:$0x1]
        %v1094 = vld [vmem:[%s522 + $0x1c] sm:$0x1]
        %v1095 = vunpack.c.l.bf16 %v1087
        %v1096 = vunpack.c.l.bf16 %v1088
        %v1097 = vunpack.c.l.bf16 %v1089
        %v1098 = vunpack.c.l.bf16 %v1090
        %v1099 = vunpack.c.l.bf16 %v1091
        %v1100 = vunpack.c.l.bf16 %v1092
        %v1101 = vunpack.c.l.bf16 %v1093
        %v1102 = vunpack.c.l.bf16 %v1094
        %v1111 = vrot.slane %v1096, 7
        %v1112 = vsel %vm583, %v1111, %v1095
        %v1113 = vrot.slane %v1097, 6
        %v1114 = vsel %vm586, %v1113, %v1112
        %v1115 = vrot.slane %v1098, 5
        %v1116 = vsel %vm589, %v1115, %v1114
        %v1117 = vrot.slane %v1099, 4
        %v1118 = vsel %vm592, %v1117, %v1116
        %v1119 = vrot.slane %v1100, 3
        %v1120 = vsel %vm595, %v1119, %v1118
        %v1121 = vrot.slane %v1101, 2
        %v1122 = vsel %vm598, %v1121, %v1120
        %v1123 = vrot.slane %v1102, 1
        %v1124 = vsel %vm601, %v1123, %v1122
        %v1126 = vmul.f32 %v1005, %v1124
        %v1127 = vsel %vm999, %v1126, 0.0
        %1128 = vadd.xlane.f32.xlu0 %v1127
        %v1129 = vpop.xlane.xlu0 %1128
        %v1130 = vrot.slane %v1095, 1
        %v1131 = vsel %vm583, %v1096, %v1130
        %v1132 = vrot.slane %v1097, 7
        %v1133 = vsel %vm586, %v1132, %v1131
        %v1134 = vrot.slane %v1098, 6
        %v1135 = vsel %vm589, %v1134, %v1133
        %v1136 = vrot.slane %v1099, 5
        %v1137 = vsel %vm592, %v1136, %v1135
        %v1138 = vrot.slane %v1100, 4
        %v1139 = vsel %vm595, %v1138, %v1137
        %v1140 = vrot.slane %v1101, 3
        %v1141 = vsel %vm598, %v1140, %v1139
        %v1142 = vrot.slane %v1102, 2
        %v1143 = vsel %vm601, %v1142, %v1141
        %v1145 = vmul.f32 %v1005, %v1143
        %v1146 = vsel %vm999, %v1145, 0.0
        %1147 = vadd.xlane.f32.xlu0 %v1146
        %v1148 = vpop.xlane.xlu0 %1147
        %v1149 = vld [vmem:[%s522] sm:$0x2]
        %v1150 = vld [vmem:[%s522 + $0x4] sm:$0x2]
        %v1151 = vld [vmem:[%s522 + $0x8] sm:$0x2]
        %v1152 = vld [vmem:[%s522 + $0xc] sm:$0x2]
        %v1153 = vld [vmem:[%s522 + $0x10] sm:$0x2]
        %v1154 = vld [vmem:[%s522 + $0x14] sm:$0x2]
        %v1155 = vld [vmem:[%s522 + $0x18] sm:$0x2]
        %v1156 = vld [vmem:[%s522 + $0x1c] sm:$0x2]
        %v1157 = vunpack.c.l.bf16 %v1149
        %v1158 = vunpack.c.l.bf16 %v1150
        %v1159 = vunpack.c.l.bf16 %v1151
        %v1160 = vunpack.c.l.bf16 %v1152
        %v1161 = vunpack.c.l.bf16 %v1153
        %v1162 = vunpack.c.l.bf16 %v1154
        %v1163 = vunpack.c.l.bf16 %v1155
        %v1164 = vunpack.c.l.bf16 %v1156
        %v1173 = vrot.slane %v1157, 2
        %v1174 = vrot.slane %v1158, 1
        %v1175 = vsel %vm583, %v1174, %v1173
        %v1176 = vsel %vm586, %v1159, %v1175
        %v1177 = vrot.slane %v1160, 7
        %v1178 = vsel %vm589, %v1177, %v1176
        %v1179 = vrot.slane %v1161, 6
        %v1180 = vsel %vm592, %v1179, %v1178
        %v1181 = vrot.slane %v1162, 5
        %v1182 = vsel %vm595, %v1181, %v1180
        %v1183 = vrot.slane %v1163, 4
        %v1184 = vsel %vm598, %v1183, %v1182
        %v1185 = vrot.slane %v1164, 3
        %v1186 = vsel %vm601, %v1185, %v1184
        %v1188 = vmul.f32 %v1005, %v1186
        %v1189 = vsel %vm999, %v1188, 0.0
        %1190 = vadd.xlane.f32.xlu0 %v1189
        %v1191 = vpop.xlane.xlu0 %1190
        %v1192 = vrot.slane %v1157, 3
        %v1193 = vrot.slane %v1158, 2
        %v1194 = vsel %vm583, %v1193, %v1192
        %v1195 = vrot.slane %v1159, 1
        %v1196 = vsel %vm586, %v1195, %v1194
        %v1197 = vsel %vm589, %v1160, %v1196
        %v1198 = vrot.slane %v1161, 7
        %v1199 = vsel %vm592, %v1198, %v1197
        %v1200 = vrot.slane %v1162, 6
        %v1201 = vsel %vm595, %v1200, %v1199
        %v1202 = vrot.slane %v1163, 5
        %v1203 = vsel %vm598, %v1202, %v1201
        %v1204 = vrot.slane %v1164, 4
        %v1205 = vsel %vm601, %v1204, %v1203
        %v1207 = vmul.f32 %v1005, %v1205
        %v1208 = vsel %vm999, %v1207, 0.0
        %1209 = vadd.xlane.f32.xlu0 %v1208
        %v1210 = vpop.xlane.xlu0 %1209
        %v1211 = vld [vmem:[%s522] sm:$0x4]
        %v1212 = vld [vmem:[%s522 + $0x4] sm:$0x4]
        %v1213 = vld [vmem:[%s522 + $0x8] sm:$0x4]
        %v1214 = vld [vmem:[%s522 + $0xc] sm:$0x4]
        %v1215 = vld [vmem:[%s522 + $0x10] sm:$0x4]
        %v1216 = vld [vmem:[%s522 + $0x14] sm:$0x4]
        %v1217 = vld [vmem:[%s522 + $0x18] sm:$0x4]
        %v1218 = vld [vmem:[%s522 + $0x1c] sm:$0x4]
        %v1219 = vunpack.c.l.bf16 %v1211
        %v1220 = vunpack.c.l.bf16 %v1212
        %v1221 = vunpack.c.l.bf16 %v1213
        %v1222 = vunpack.c.l.bf16 %v1214
        %v1223 = vunpack.c.l.bf16 %v1215
        %v1224 = vunpack.c.l.bf16 %v1216
        %v1225 = vunpack.c.l.bf16 %v1217
        %v1226 = vunpack.c.l.bf16 %v1218
        %v1235 = vrot.slane %v1219, 4
        %v1236 = vrot.slane %v1220, 3
        %v1237 = vsel %vm583, %v1236, %v1235
        %v1238 = vrot.slane %v1221, 2
        %v1239 = vsel %vm586, %v1238, %v1237
        %v1240 = vrot.slane %v1222, 1
        %v1241 = vsel %vm589, %v1240, %v1239
        %v1242 = vsel %vm592, %v1223, %v1241
        %v1243 = vrot.slane %v1224, 7
        %v1244 = vsel %vm595, %v1243, %v1242
        %v1245 = vrot.slane %v1225, 6
        %v1246 = vsel %vm598, %v1245, %v1244
        %v1247 = vrot.slane %v1226, 5
        %v1248 = vsel %vm601, %v1247, %v1246
        %v1250 = vmul.f32 %v1005, %v1248
        %v1251 = vsel %vm999, %v1250, 0.0
        %1252 = vadd.xlane.f32.xlu0 %v1251
        %v1253 = vpop.xlane.xlu0 %1252
        %v1254 = vrot.slane %v1219, 5
        %v1255 = vrot.slane %v1220, 4
        %v1256 = vsel %vm583, %v1255, %v1254
        %v1257 = vrot.slane %v1221, 3
        %v1258 = vsel %vm586, %v1257, %v1256
        %v1259 = vrot.slane %v1222, 2
        %v1260 = vsel %vm589, %v1259, %v1258
        %v1261 = vrot.slane %v1223, 1
        %v1262 = vsel %vm592, %v1261, %v1260
        %v1263 = vsel %vm595, %v1224, %v1262
        %v1264 = vrot.slane %v1225, 7
        %v1265 = vsel %vm598, %v1264, %v1263
        %v1266 = vrot.slane %v1226, 6
        %v1267 = vsel %vm601, %v1266, %v1265
        %v1269 = vmul.f32 %v1005, %v1267
        %v1270 = vsel %vm999, %v1269, 0.0
        %1271 = vadd.xlane.f32.xlu0 %v1270
        %v1272 = vpop.xlane.xlu0 %1271
        %v1273 = vld [vmem:[%s522] sm:$0x8]
        %v1274 = vld [vmem:[%s522 + $0x4] sm:$0x8]
        %v1275 = vld [vmem:[%s522 + $0x8] sm:$0x8]
        %v1276 = vld [vmem:[%s522 + $0xc] sm:$0x8]
        %v1277 = vld [vmem:[%s522 + $0x10] sm:$0x8]
        %v1278 = vld [vmem:[%s522 + $0x14] sm:$0x8]
        %v1279 = vld [vmem:[%s522 + $0x18] sm:$0x8]
        %v1280 = vld [vmem:[%s522 + $0x1c] sm:$0x8]
        %v1281 = vunpack.c.l.bf16 %v1273
        %v1282 = vunpack.c.l.bf16 %v1274
        %v1283 = vunpack.c.l.bf16 %v1275
        %v1284 = vunpack.c.l.bf16 %v1276
        %v1285 = vunpack.c.l.bf16 %v1277
        %v1286 = vunpack.c.l.bf16 %v1278
        %v1287 = vunpack.c.l.bf16 %v1279
        %v1288 = vunpack.c.l.bf16 %v1280
        %v1297 = vrot.slane %v1281, 6
        %v1298 = vrot.slane %v1282, 5
        %v1299 = vsel %vm583, %v1298, %v1297
        %v1300 = vrot.slane %v1283, 4
        %v1301 = vsel %vm586, %v1300, %v1299
        %v1302 = vrot.slane %v1284, 3
        %v1303 = vsel %vm589, %v1302, %v1301
        %v1304 = vrot.slane %v1285, 2
        %v1305 = vsel %vm592, %v1304, %v1303
        %v1306 = vrot.slane %v1286, 1
        %v1307 = vsel %vm595, %v1306, %v1305
        %v1308 = vsel %vm598, %v1287, %v1307
        %v1309 = vrot.slane %v1288, 7
        %v1310 = vsel %vm601, %v1309, %v1308
        %v1312 = vmul.f32 %v1005, %v1310
        %v1313 = vsel %vm999, %v1312, 0.0
        %1314 = vadd.xlane.f32.xlu0 %v1313
        %v1315 = vpop.xlane.xlu0 %1314
        %v1316 = vrot.slane %v1281, 7
        %v1317 = vrot.slane %v1282, 6
        %v1318 = vsel %vm583, %v1317, %v1316
        %v1319 = vrot.slane %v1283, 5
        %v1320 = vsel %vm586, %v1319, %v1318
        %v1321 = vrot.slane %v1284, 4
        %v1322 = vsel %vm589, %v1321, %v1320
        %v1323 = vrot.slane %v1285, 3
        %v1324 = vsel %vm592, %v1323, %v1322
        %v1325 = vrot.slane %v1286, 2
        %v1326 = vsel %vm595, %v1325, %v1324
        %v1327 = vrot.slane %v1287, 1
        %v1328 = vsel %vm598, %v1327, %v1326
        %v1329 = vsel %vm601, %v1288, %v1328
        %v1331 = vmul.f32 %v1005, %v1329
        %v1332 = vsel %vm999, %v1331, 0.0
        %1333 = vadd.xlane.f32.xlu0 %v1332
        %v1334 = vpop.xlane.xlu0 %1333
        %vm1335 = vcmask 7168
        %v1336 = vsel %vm1335, %v1129, %v1148
        %vm1337 = vcmask 15360
        %v1338 = vsel %vm1337, %v1336, %v1191
        %vm1339 = vcmask 23552
        %v1340 = vsel %vm1339, %v1338, %v1210
        %vm1341 = vcmask 31744
        %v1342 = vsel %vm1341, %v1340, %v1253
        %vm1343 = vcmask 39936
        %v1344 = vsel %vm1343, %v1342, %v1272
        %vm1345 = vcmask 48128
        %v1346 = vsel %vm1345, %v1344, %v1315
        %vm1347 = vcmask 56320
        %v1348 = vsel %vm1347, %v1346, %v1334
        %v1349 = vmul.f32 %v1348, %v1009
        %1351 = vrot.lane.b32.xlu0 %v1349, 40
        %v1352 = vpop.permute.xlu0 %1351
        %vm1354 = vcmask 392512
        %1355 = vst.msk [vmem:[%s544] sm:$0xff] %vm1354, %v1352
        %p1356 = scmp.lt.s32.totalorder %s25, 1
        %s1357 = scalar_select %p1356, %s25, 1
        %p1358 = scmp.lt.s32.totalorder %s27, 3
        %s1359 = scalar_select %p1358, %s27, 3
        %p1360 = scmp.lt.s32.totalorder %s26, 0
        %s1361 = scalar_select %p1360, %s26, 0
        %s1362 = sadd.s32 %s1361, %s1359
        %s1363 = smul.addr %s1357, 4
        %s1364 = sadd.s32 %s1362, %s1363
        %s1365 = smul.addr %s1364, 8
        %s1366 = scalar_lea.vmem %s8, %s1365
        // Predicated region
        $region57: #{ipa_forward.1} parent=51 // pred_check
          %p1367 = pneg %p278
        $region58: #{ipa_forward.1} parent=51 // pred_check_branch
          %1369 = sbr.rel (%p1367) target = $region60
        $region59: #{ipa_forward.1} parent=51 // pred_region
          _
        $region60: #{ipa_forward.1} parent=51 // pred_fallthru
          _
      $region52: #{ipa_forward.1} parent=5 // pred_fallthru
        _
      %p1370 = scmp.le.s32.totalorder 2, %s15
      // Predicated region
      $region61: #{ipa_forward.1} parent=5 // pred_check
        %p1371 = pneg %p1370
      $region62: #{ipa_forward.1} parent=5 // pred_check_branch
        %1373 = sbr.rel (%p1371) target = $region64
      $region63: #{ipa_forward.1} parent=5 // pred_region
        %s1374 = ssub.s32 %s15, 2
        // Predicated region
        $region65: #{ipa_forward.1} parent=63 // pred_check
          %p1375 = pneg %p284
        $region66: #{ipa_forward.1} parent=63 // pred_check_branch
          %1377 = sbr.rel (%p1375) target = $region68
        $region67: #{ipa_forward.1} parent=63 // pred_region
          %p1378 = scmp.lt.s32.totalorder %s28, 1
          %s1379 = scalar_select %p1378, %s28, 1
          %p1380 = scmp.lt.s32.totalorder %s30, 3
          %s1381 = scalar_select %p1380, %s30, 3
          %p1382 = scmp.lt.s32.totalorder %s29, 0
          %s1383 = scalar_select %p1382, %s29, 0
          %s1384 = sadd.s32 %s1383, %s1381
          %s1385 = smul.addr %s1379, 4
          %s1386 = sadd.s32 %s1384, %s1385
          %s1387 = smul.addr %s1386, 8
          %s1388 = scalar_lea.vmem %s8, %s1387
        $region68: #{ipa_forward.1} parent=63 // pred_fallthru
          _
      $region64: #{ipa_forward.1} parent=5 // pred_fallthru
        _
    $region6: #{ipa_forward.1} parent=1 // loop_footer
      %s19 = sadd.s32 1, %s15
    $region7: #{ipa_forward.1} parent=1 // loop_footer_branch
      %14 = sbr.rel target = $region3
    $region8: #{ipa_forward.1} parent=1 // loop_exit
      _
    %1389 = vsyncpa [#allocation3], 1
    %s1390 = scalar_lea.sflag [#allocation3], 1
    %1391 = vsyncpa %s1390, 1

</llo_original>
